<compile_context>
chip_gen: v7x
topology: tpu7x:2x2x1
jax: 0.10.0
libtpu: 0.0.40
codegen_flags: <defaults>
</compile_context>

<pallas_src>
import functools
import math

import jax
import jax.numpy as jnp
from jax import lax
from jax.experimental import pallas as pl
from jax.experimental.pallas import tpu as pltpu

# Finite stand-in for -inf: keeps the online softmax NaN-free even for rows with
# enc_hs_len == 0 (PyTorch would produce NaN there); masked weights still come out 0.
_NEG_INF = -1e30


def _mha_add_main_kernel(lens_ref, enc_ref, dec_ref, wq_ref, bq_ref, wk_ref,
                         wv_ref, gw_ref, gb_ref, wo_ref,
                         c_ref, e_ref,
                         q_sc, m_sc, l_sc, acc_sc, cproj_sc, *, scaling):
    """grid = (B_tiles, heads, T_tiles); the T (reduction) axis is last."""
    h = pl.program_id(1)
    t = pl.program_id(2)
    n_heads = pl.num_programs(1)
    n_t = pl.num_programs(2)

    bB, bT, D = enc_ref.shape
    Ak = wk_ref.shape[-1]
    Av = wv_ref.shape[-1]

    @pl.when(jnp.logical_and(h == 0, t == 0))
    def _init_batch_tile():
        cproj_sc[...] = jnp.zeros_like(cproj_sc)

    @pl.when(t == 0)
    def _init_head():
        # query projection for this head (tiny matmul, done once per (b-tile, head))
        q_sc[...] = (jnp.dot(dec_ref[...], wq_ref[...],
                             preferred_element_type=jnp.float32) + bq_ref[...])
        m_sc[...] = jnp.full(m_sc.shape, _NEG_INF, dtype=m_sc.dtype)
        l_sc[...] = jnp.zeros_like(l_sc)
        acc_sc[...] = jnp.zeros_like(acc_sc)

    # K / V projections for this (batch-tile, time-tile) on the MXU.
    enc2d = enc_ref[...].astype(jnp.float32).reshape(bB * bT, D)
    k = jnp.dot(enc2d, wk_ref[...], preferred_element_type=jnp.float32)
    v = jnp.dot(enc2d, wv_ref[...], preferred_element_type=jnp.float32)
    k3 = k.reshape(bB, bT, Ak)
    v3 = v.reshape(bB, bT, Av)

    # Additive attention logits: gvec(tanh(k + q))  ->  (bB, bT).
    act = jnp.tanh(k3 + q_sc[...][:, None, :])
    e_raw = jnp.sum(act * gw_ref[...][None, :, :], axis=-1) + gb_ref[...]

    # Padding mask from sequence lengths (scale-then-mask == mask-then-scale here).
    t_idx = t * bT + lax.broadcasted_iota(jnp.int32, (bB, bT), 1)
    valid = t_idx < lens_ref[...]
    s = jnp.where(valid, e_raw * scaling, _NEG_INF)
    e_ref[...] = s.astype(e_ref.dtype)

    # Online-softmax accumulation of the per-head context vector (f32 scratch).
    m_prev = m_sc[...]
    m_new = jnp.maximum(m_prev, jnp.max(s, axis=-1, keepdims=True))
    alpha = jnp.exp(m_prev - m_new)
    p = jnp.exp(s - m_new)                                       # (bB, bT)
    l_sc[...] = alpha * l_sc[...] + jnp.sum(p, axis=-1, keepdims=True)
    acc_sc[...] = alpha * acc_sc[...] + jnp.sum(p[:, :, None] * v3, axis=1)
    m_sc[...] = m_new

    @pl.when(t == n_t - 1)
    def _finalize_head():
        inv_l = pl.reciprocal(l_sc[...], approx=True)            # EUP, once per head
        c_h = acc_sc[...] * inv_l                                # (bB, Av)
        # Fold the output projection in here: accumulate c_h @ Wo[h] across heads.
        cproj_sc[...] += jnp.dot(c_h, wo_ref[...],
                                 preferred_element_type=jnp.float32)

    @pl.when(jnp.logical_and(h == n_heads - 1, t == n_t - 1))
    def _write_context():
        c_ref[...] = cproj_sc[...].astype(c_ref.dtype)


def _masked_softmax_kernel(e_ref, w_ref):
    """grid = (heads, B_tiles); full T per block: w = softmax(masked scaled logits)."""
    s = e_ref[...]                                               # (bB, T)
    m = jnp.max(s, axis=-1, keepdims=True)
    p = jnp.exp(s - m)
    denom = jnp.sum(p, axis=-1, keepdims=True)
    w_ref[...] = (p * pl.reciprocal(denom, approx=True)).astype(w_ref.dtype)


def _pick_batch_tile(B):
    return 8 if (B > 8 and B % 8 == 0) else B


def _pick_time_tile(T, D, bB, budget_bytes=8 * 1024 * 1024):
    """Largest lane-dense (128-multiple) divisor of T whose double-buffered enc tile
    fits the VMEM budget; falls back to full T."""
    def tile_bytes(bt):
        return 2 * bB * bt * D * 4            # double-buffered f32 enc tile
    if tile_bytes(T) <= budget_bytes:
        return T
    best = None
    c = 128
    while c < T:
        if T % c == 0 and tile_bytes(c) <= budget_bytes:
            best = c
        c += 128
    return best if best is not None else T


def att_multi_head_add_forward(enc_hs_pad, enc_hs_len, dec_z, att_prev,
                               wq, bq, wk, wv, gw, gb, wo):
    """Pallas AttMultiHeadAdd forward.

    enc_hs_pad: (B, T, eprojs)       padded encoder hidden states
    enc_hs_len: (B,) int             valid lengths
    dec_z:      (B, dunits) or None  decoder state
    att_prev:   unused (interface parity with the PyTorch module)
    wq: (H, dunits, att_dim_k), bq: (H, att_dim_k)     [mlp_q weight.T / bias]
    wk: (H, eprojs, att_dim_k)                         [mlp_k weight.T]
    wv: (H, eprojs, att_dim_v)                         [mlp_v weight.T]
    gw: (H, att_dim_k), gb: (H,)                       [gvec weight / bias]
    wo: (H * att_dim_v, eprojs)                        [mlp_o weight.T]
    returns: (c, w) with c: (B, eprojs), w: (H, B, T) stacked attention weights
             (the PyTorch module returns the same weights as a length-H list).
    """
    del att_prev  # dummy in the reference module as well
    B, T, E = enc_hs_pad.shape
    H, Ddec, Ak = wq.shape
    Av = wv.shape[-1]
    assert wo.shape == (H * Av, E)
    scaling = 1.0 / math.sqrt(Ak)
    out_dtype = enc_hs_pad.dtype

    if dec_z is None:
        dec_z = jnp.zeros((B, Ddec), dtype=jnp.float32)
    dec_z = dec_z.reshape(B, Ddec).astype(jnp.float32)
    lens2d = jnp.asarray(enc_hs_len, dtype=jnp.int32).reshape(B, 1)

    # Lane-dense time axis: pad T to a multiple of 128 when it is long enough to
    # tile; padded frames are masked out via `lens` so they contribute nothing.
    T_orig = T
    if T > 512 and T % 128 != 0:
        T_pad = pl.cdiv(T, 128) * 128
        enc_hs_pad = jnp.pad(enc_hs_pad, ((0, 0), (0, T_pad - T), (0, 0)))
        T = T_pad

    bB = _pick_batch_tile(B)
    bT = _pick_time_tile(T, E, bB)
    n_b = B // bB
    n_t = T // bT

    # Head-stacked parameters reshaped so every per-head block is a clean 2-D tile.
    wq = wq.astype(jnp.float32)
    wk = wk.astype(jnp.float32)
    wv = wv.astype(jnp.float32)
    bq3 = bq.reshape(H, 1, Ak).astype(jnp.float32)
    gw3 = gw.reshape(H, 1, Ak).astype(jnp.float32)
    gb3 = gb.reshape(H, 1, 1).astype(jnp.float32)
    wo3 = wo.reshape(H, Av, E).astype(jnp.float32)   # per-head slice of mlp_o

    # Advisory cost estimate (mostly MXU work on the K/V projections).
    flops = (2 * H * B * T * E * (Ak + Av)       # K/V projections
             + 4 * H * B * T * Ak                # additive score
             + 2 * H * B * T * Av                # weighted value sum
             + 2 * H * B * Ddec * Ak             # query projection
             + 2 * H * B * Av * E)               # output projection
    transcendentals = H * B * T * (Ak + 2)       # tanh + exp
    bytes_accessed = 4 * (H * B * T * E          # enc re-streamed once per head
                          + H * (E * (Ak + Av) + Ddec * Ak + Av * E + 2 * Ak + 1)
                          + 2 * H * B * T + B * E + B * Ddec + B)

    vmem_est = 4 * (2 * bB * bT * E
                    + 2 * (E * (Ak + Av) + Ddec * Ak + Av * E + 2 * Ak + 1)
                    + 2 * bB * bT + 2 * bB * E + 2 * (bB * Ddec + bB)
                    + bB * (Ak + Av + E + 2))
    vmem_limit = int(min(56 * 1024 * 1024, max(32 * 1024 * 1024, 2 * vmem_est)))

    kernel = functools.partial(_mha_add_main_kernel, scaling=scaling)
    c, e_scaled = pl.pallas_call(
        kernel,
        out_shape=(
            jax.ShapeDtypeStruct((B, E), out_dtype),
            jax.ShapeDtypeStruct((H, B, T), jnp.float32),
        ),
        grid_spec=pltpu.PrefetchScalarGridSpec(
            num_scalar_prefetch=0,
            grid=(n_b, H, n_t),
            in_specs=[
                pl.BlockSpec((bB, 1), lambda b, h, t: (b, 0)),             # lens
                pl.BlockSpec((bB, bT, E), lambda b, h, t: (b, t, 0)),      # enc
                pl.BlockSpec((bB, Ddec), lambda b, h, t: (b, 0)),          # dec_z
                pl.BlockSpec((None, Ddec, Ak), lambda b, h, t: (h, 0, 0)),  # Wq
                pl.BlockSpec((None, 1, Ak), lambda b, h, t: (h, 0, 0)),     # bq
                pl.BlockSpec((None, E, Ak), lambda b, h, t: (h, 0, 0)),     # Wk
                pl.BlockSpec((None, E, Av), lambda b, h, t: (h, 0, 0)),     # Wv
                pl.BlockSpec((None, 1, Ak), lambda b, h, t: (h, 0, 0)),     # gvec w
                pl.BlockSpec((None, 1, 1), lambda b, h, t: (h, 0, 0)),      # gvec b
                pl.BlockSpec((None, Av, E), lambda b, h, t: (h, 0, 0)),     # Wo slice
            ],
            out_specs=(
                pl.BlockSpec((bB, E), lambda b, h, t: (b, 0)),             # c (resident)
                pl.BlockSpec((None, bB, bT), lambda b, h, t: (h, b, t)),   # masked logits
            ),
            scratch_shapes=[
                pltpu.VMEM((bB, Ak), jnp.float32),   # q
                pltpu.VMEM((bB, 1), jnp.float32),    # running max
                pltpu.VMEM((bB, 1), jnp.float32),    # running sum
                pltpu.VMEM((bB, Av), jnp.float32),   # unnormalized per-head context
                pltpu.VMEM((bB, E), jnp.float32),    # head-accumulated projection
            ],
        ),
        compiler_params=pltpu.CompilerParams(
            dimension_semantics=("parallel", "arbitrary", "arbitrary"),
            vmem_limit_bytes=vmem_limit,
        ),
        cost_estimate=pl.CostEstimate(flops=int(flops),
                                      transcendentals=int(transcendentals),
                                      bytes_accessed=int(bytes_accessed)),
    )(lens2d, enc_hs_pad, dec_z, wq, bq3, wk, wv, gw3, gb3, wo3)

    # Second (tiny) pass: normalized attention weights = row softmax over full T.
    w = pl.pallas_call(
        _masked_softmax_kernel,
        out_shape=jax.ShapeDtypeStruct((H, B, T), jnp.float32),
        grid_spec=pltpu.PrefetchScalarGridSpec(
            num_scalar_prefetch=0,
            grid=(H, n_b),
            in_specs=[pl.BlockSpec((None, bB, T), lambda h, b: (h, b, 0))],
            out_specs=pl.BlockSpec((None, bB, T), lambda h, b: (h, b, 0)),
        ),
        compiler_params=pltpu.CompilerParams(
            dimension_semantics=("parallel", "parallel")),
    )(e_scaled)

    if T != T_orig:
        w = w[:, :, :T_orig]
    return c, w


def _reference_forward(enc, lens, dec_z, wq, bq, wk, wv, gw, gb, wo):
    """Plain-JAX reference mirroring the PyTorch module (same weight convention)."""
    B, T, _ = enc.shape
    H, _, Ak = wq.shape
    scaling = 1.0 / math.sqrt(Ak)
    pad = jnp.arange(T)[None, :] >= lens[:, None]
    ws, cs = [], []
    for h in range(H):
        k = enc @ wk[h]
        v = enc @ wv[h]
        q = dec_z @ wq[h] + bq[h]
        e = jnp.sum(jnp.tanh(k + q[:, None, :]) * gw[h][None, None, :], axis=-1) + gb[h]
        e = jnp.where(pad, -jnp.inf, e)
        w = jax.nn.softmax(scaling * e, axis=1)
        ws.append(w)
        cs.append(jnp.sum(v * w[:, :, None], axis=1))
    c = jnp.concatenate(cs, axis=1) @ wo
    return c, jnp.stack(ws, axis=0)


if __name__ == "__main__":
    key = jax.random.PRNGKey(0)
    B, T, E = 2, 8, 32        # batch, T_max, eprojs
    Ddec = 16                 # dunits
    H = 2                     # aheads
    Ak, Av = 32, 32           # att_dim_k, att_dim_v

    keys = jax.random.split(key, 9)
    enc_hs_pad = jax.random.normal(keys[0], (B, T, E), dtype=jnp.float32)
    enc_hs_len = jnp.array([8, 5], dtype=jnp.int32)   # second sequence padded past t=5
    dec_z = jax.random.normal(keys[1], (B, Ddec), dtype=jnp.float32)

    s = 0.2
    wq = s * jax.random.normal(keys[2], (H, Ddec, Ak), dtype=jnp.float32)
    bq = s * jax.random.normal(keys[3], (H, Ak), dtype=jnp.float32)
    wk = s * jax.random.normal(keys[4], (H, E, Ak), dtype=jnp.float32)
    wv = s * jax.random.normal(keys[5], (H, E, Av), dtype=jnp.float32)
    gw = s * jax.random.normal(keys[6], (H, Ak), dtype=jnp.float32)
    gb = s * jax.random.normal(keys[7], (H,), dtype=jnp.float32)
    wo = s * jax.random.normal(keys[8], (H * Av, E), dtype=jnp.float32)

    c, w = att_multi_head_add_forward(enc_hs_pad, enc_hs_len, dec_z, None,
                                      wq, bq, wk, wv, gw, gb, wo)
    jax.block_until_ready((c, w))

    c_ref, w_ref = _reference_forward(enc_hs_pad, enc_hs_len, dec_z,
                                      wq, bq, wk, wv, gw, gb, wo)

    assert c.shape == (B, E) and w.shape == (H, B, T)
    assert bool(jnp.allclose(c, c_ref, rtol=5e-3, atol=5e-3)), "context mismatch"
    assert bool(jnp.allclose(w, w_ref, rtol=5e-3, atol=5e-3)), "attention-weight mismatch"
    print("KERNEL_OK")
</pallas_src>

<mosaic_0001>
module attributes {stable_mosaic.version = 11 : i64} {
  func.func @_mha_add_main_kernel(%arg0: i32, %arg1: i32, %arg2: i32, %arg3: memref<2x1xi32, #tpu.memory_space<vmem>>, %arg4: memref<2x8x32xf32, #tpu.memory_space<vmem>>, %arg5: memref<2x16xf32, #tpu.memory_space<vmem>>, %arg6: memref<1x16x32xf32, #tpu.memory_space<vmem>>, %arg7: memref<1x1x32xf32, #tpu.memory_space<vmem>>, %arg8: memref<1x32x32xf32, #tpu.memory_space<vmem>>, %arg9: memref<1x32x32xf32, #tpu.memory_space<vmem>>, %arg10: memref<1x1x32xf32, #tpu.memory_space<vmem>>, %arg11: memref<1x1x1xf32, #tpu.memory_space<vmem>>, %arg12: memref<1x32x32xf32, #tpu.memory_space<vmem>>, %arg13: memref<2x32xf32, #tpu.memory_space<vmem>>, %arg14: memref<1x2x8xf32, #tpu.memory_space<vmem>>, %arg15: memref<2x32xf32, #tpu.memory_space<vmem>>, %arg16: memref<2x1xf32, #tpu.memory_space<vmem>>, %arg17: memref<2x1xf32, #tpu.memory_space<vmem>>, %arg18: memref<2x32xf32, #tpu.memory_space<vmem>>, %arg19: memref<2x32xf32, #tpu.memory_space<vmem>>) attributes {dimension_semantics = [#tpu.dimension_semantics<parallel>, #tpu.dimension_semantics<arbitrary>, #tpu.dimension_semantics<arbitrary>], iteration_bounds = array<i64: 1, 2, 1>, scalar_prefetch = 0 : i64, scratch_operands = 5 : i64, tpu.core_type = #tpu.core_type<tc>, window_params = [{transform_indices = @transform_0, window_bounds = array<i64: 2, 1>}, {transform_indices = @transform_1, window_bounds = array<i64: 2, 8, 32>}, {transform_indices = @transform_2, window_bounds = array<i64: 2, 16>}, {transform_indices = @transform_3, window_bounds = array<i64: 1, 16, 32>}, {transform_indices = @transform_4, window_bounds = array<i64: 1, 1, 32>}, {transform_indices = @transform_5, window_bounds = array<i64: 1, 32, 32>}, {transform_indices = @transform_6, window_bounds = array<i64: 1, 32, 32>}, {transform_indices = @transform_7, window_bounds = array<i64: 1, 1, 32>}, {transform_indices = @transform_8, window_bounds = array<i64: 1, 1, 1>}, {transform_indices = @transform_9, window_bounds = array<i64: 1, 32, 32>}, {transform_indices = @transform_10, window_bounds = array<i64: 2, 32>}, {transform_indices = @transform_11, window_bounds = array<i64: 1, 2, 8>}]} {
    %c0_i32 = arith.constant 0 : i32
    %0 = arith.cmpi eq, %arg1, %c0_i32 : i32
    %c0_i32_0 = arith.constant 0 : i32
    %1 = arith.cmpi eq, %arg2, %c0_i32_0 : i32
    %2 = arith.andi %0, %1 : i1
    %3 = arith.extui %2 : i1 to i32
    %c0_i32_1 = arith.constant 0 : i32
    %4 = arith.cmpi ne, %3, %c0_i32_1 : i32
    scf.if %4 {
      %cst_48 = arith.constant 0.000000e+00 : f32
      %80 = vector.broadcast %cst_48 : f32 to vector<2x32xf32>
      %c0_49 = arith.constant 0 : index
      %c0_50 = arith.constant 0 : index
      %81 = vector.load %arg19[%c0_49, %c0_50] : memref<2x32xf32, #tpu.memory_space<vmem>>, vector<2x32xf32>
      tpu.vector_store %arg19[%c0_49, %c0_50], %80 {strides = array<i32>} : memref<2x32xf32, #tpu.memory_space<vmem>>, vector<2x32xf32>,
    } else {
    }
    %c0_i32_2 = arith.constant 0 : i32
    %5 = arith.cmpi eq, %arg2, %c0_i32_2 : i32
    %6 = arith.extui %5 : i1 to i32
    %c0_i32_3 = arith.constant 0 : i32
    %7 = arith.cmpi ne, %6, %c0_i32_3 : i32
    scf.if %7 {
      %c0_48 = arith.constant 0 : index
      %c0_49 = arith.constant 0 : index
      %80 = vector.load %arg5[%c0_48, %c0_49] : memref<2x16xf32, #tpu.memory_space<vmem>>, vector<2x16xf32>
      %c0_50 = arith.constant 0 : index
      %c0_51 = arith.constant 0 : index
      %c0_52 = arith.constant 0 : index
      %81 = vector.load %arg6[%c0_50, %c0_51, %c0_52] : memref<1x16x32xf32, #tpu.memory_space<vmem>>, vector<1x16x32xf32>
      %82 = vector.shape_cast %81 : vector<1x16x32xf32> to vector<16x32xf32>
      %cst_53 = arith.constant dense<0.000000e+00> : vector<2x32xf32>
      %83 = tpu.matmul %80, %82, %cst_53 {dimension_numbers = #tpu.dot_dimension_numbers<[1], [0], [0], [1], [0, 0, 1, 1], [], []>} : vector<2x16xf32>, vector<16x32xf32>, vector<2x32xf32> -> vector<2x32xf32>
      %c0_54 = arith.constant 0 : index
      %c0_55 = arith.constant 0 : index
      %c0_56 = arith.constant 0 : index
      %84 = vector.load %arg7[%c0_54, %c0_55, %c0_56] : memref<1x1x32xf32, #tpu.memory_space<vmem>>, vector<1x1x32xf32>
      %85 = vector.shape_cast %84 : vector<1x1x32xf32> to vector<1x32xf32>
      %86 = vector.broadcast %85 : vector<1x32xf32> to vector<2x32xf32>
      %87 = arith.addf %83, %86 : vector<2x32xf32>
      %c0_57 = arith.constant 0 : index
      %c0_58 = arith.constant 0 : index
      %88 = vector.load %arg15[%c0_57, %c0_58] : memref<2x32xf32, #tpu.memory_space<vmem>>, vector<2x32xf32>
      tpu.vector_store %arg15[%c0_57, %c0_58], %87 {strides = array<i32>} : memref<2x32xf32, #tpu.memory_space<vmem>>, vector<2x32xf32>,
      %cst_59 = arith.constant -1.000000e+30 : f32
      %89 = vector.broadcast %cst_59 : f32 to vector<2x1xf32>
      %c0_60 = arith.constant 0 : index
      %c0_61 = arith.constant 0 : index
      %90 = vector.load %arg16[%c0_60, %c0_61] : memref<2x1xf32, #tpu.memory_space<vmem>>, vector<2x1xf32>
      tpu.vector_store %arg16[%c0_60, %c0_61], %89 {strides = array<i32>} : memref<2x1xf32, #tpu.memory_space<vmem>>, vector<2x1xf32>,
      %cst_62 = arith.constant 0.000000e+00 : f32
      %91 = vector.broadcast %cst_62 : f32 to vector<2x1xf32>
      %c0_63 = arith.constant 0 : index
      %c0_64 = arith.constant 0 : index
      %92 = vector.load %arg17[%c0_63, %c0_64] : memref<2x1xf32, #tpu.memory_space<vmem>>, vector<2x1xf32>
      tpu.vector_store %arg17[%c0_63, %c0_64], %91 {strides = array<i32>} : memref<2x1xf32, #tpu.memory_space<vmem>>, vector<2x1xf32>,
      %cst_65 = arith.constant 0.000000e+00 : f32
      %93 = vector.broadcast %cst_65 : f32 to vector<2x32xf32>
      %c0_66 = arith.constant 0 : index
      %c0_67 = arith.constant 0 : index
      %94 = vector.load %arg18[%c0_66, %c0_67] : memref<2x32xf32, #tpu.memory_space<vmem>>, vector<2x32xf32>
      tpu.vector_store %arg18[%c0_66, %c0_67], %93 {strides = array<i32>} : memref<2x32xf32, #tpu.memory_space<vmem>>, vector<2x32xf32>,
    } else {
    }
    %c0 = arith.constant 0 : index
    %c0_4 = arith.constant 0 : index
    %c0_5 = arith.constant 0 : index
    %8 = vector.load %arg4[%c0, %c0_4, %c0_5] : memref<2x8x32xf32, #tpu.memory_space<vmem>>, vector<2x8x32xf32>
    %9 = vector.shape_cast %8 : vector<2x8x32xf32> to vector<16x32xf32>
    %c0_6 = arith.constant 0 : index
    %c0_7 = arith.constant 0 : index
    %c0_8 = arith.constant 0 : index
    %10 = vector.load %arg8[%c0_6, %c0_7, %c0_8] : memref<1x32x32xf32, #tpu.memory_space<vmem>>, vector<1x32x32xf32>
    %11 = vector.shape_cast %10 : vector<1x32x32xf32> to vector<32x32xf32>
    %cst = arith.constant dense<0.000000e+00> : vector<16x32xf32>
    %12 = tpu.matmul %9, %11, %cst {dimension_numbers = #tpu.dot_dimension_numbers<[1], [0], [0], [1], [0, 0, 1, 1], [], []>} : vector<16x32xf32>, vector<32x32xf32>, vector<16x32xf32> -> vector<16x32xf32>
    %c0_9 = arith.constant 0 : index
    %c0_10 = arith.constant 0 : index
    %c0_11 = arith.constant 0 : index
    %13 = vector.load %arg9[%c0_9, %c0_10, %c0_11] : memref<1x32x32xf32, #tpu.memory_space<vmem>>, vector<1x32x32xf32>
    %14 = vector.shape_cast %13 : vector<1x32x32xf32> to vector<32x32xf32>
    %cst_12 = arith.constant dense<0.000000e+00> : vector<16x32xf32>
    %15 = tpu.matmul %9, %14, %cst_12 {dimension_numbers = #tpu.dot_dimension_numbers<[1], [0], [0], [1], [0, 0, 1, 1], [], []>} : vector<16x32xf32>, vector<32x32xf32>, vector<16x32xf32> -> vector<16x32xf32>
    %16 = vector.shape_cast %12 : vector<16x32xf32> to vector<2x8x32xf32>
    %17 = vector.shape_cast %15 : vector<16x32xf32> to vector<2x8x32xf32>
    %c0_13 = arith.constant 0 : index
    %c0_14 = arith.constant 0 : index
    %18 = vector.load %arg15[%c0_13, %c0_14] : memref<2x32xf32, #tpu.memory_space<vmem>>, vector<2x32xf32>
    %19 = vector.shape_cast %18 : vector<2x32xf32> to vector<2x1x32xf32>
    %20 = vector.broadcast %19 : vector<2x1x32xf32> to vector<2x8x32xf32>
    %21 = arith.addf %16, %20 : vector<2x8x32xf32>
    %22 = math.tanh %21 : vector<2x8x32xf32>
    %c0_15 = arith.constant 0 : index
    %c0_16 = arith.constant 0 : index
    %c0_17 = arith.constant 0 : index
    %23 = vector.load %arg10[%c0_15, %c0_16, %c0_17] : memref<1x1x32xf32, #tpu.memory_space<vmem>>, vector<1x1x32xf32>
    %24 = vector.shape_cast %23 : vector<1x1x32xf32> to vector<1x32xf32>
    %25 = vector.shape_cast %24 : vector<1x32xf32> to vector<1x1x32xf32>
    %26 = vector.broadcast %25 : vector<1x1x32xf32> to vector<2x8x32xf32>
    %27 = arith.mulf %22, %26 : vector<2x8x32xf32>
    %cst_18 = arith.constant dense<0.000000e+00> : vector<2x8xf32>
    %28 = vector.multi_reduction <add>, %27, %cst_18 [2] : vector<2x8x32xf32> to vector<2x8xf32>
    %c0_19 = arith.constant 0 : index
    %c0_20 = arith.constant 0 : index
    %c0_21 = arith.constant 0 : index
    %29 = vector.load %arg11[%c0_19, %c0_20, %c0_21] : memref<1x1x1xf32, #tpu.memory_space<vmem>>, vector<1x1x1xf32>
    %30 = vector.shape_cast %29 : vector<1x1x1xf32> to vector<1x1xf32>
    %31 = vector.broadcast %30 : vector<1x1xf32> to vector<2x8xf32>
    %32 = arith.addf %28, %31 : vector<2x8xf32>
    %c8_i32 = arith.constant 8 : i32
    %33 = arith.muli %arg2, %c8_i32 : i32
    %34 = tpu.iota {dimensions = array<i32: 1>} : vector<2x8xi32>
    %35 = vector.broadcast %33 : i32 to vector<2x8xi32>
    %36 = arith.addi %35, %34 : vector<2x8xi32>
    %c0_22 = arith.constant 0 : index
    %c0_23 = arith.constant 0 : index
    %37 = vector.load %arg3[%c0_22, %c0_23] : memref<2x1xi32, #tpu.memory_space<vmem>>, vector<2x1xi32>
    %38 = vector.broadcast %37 : vector<2x1xi32> to vector<2x8xi32>
    %39 = arith.cmpi slt, %36, %38 : vector<2x8xi32>
    %cst_24 = arith.constant 0.176776692 : f32
    %40 = vector.broadcast %cst_24 : f32 to vector<2x8xf32>
    %41 = arith.mulf %32, %40 : vector<2x8xf32>
    %cst_25 = arith.constant -1.000000e+30 : f32
    %42 = vector.broadcast %cst_25 : f32 to vector<2x8xf32>
    %43 = arith.select %39, %41, %42 : vector<2x8xi1>, vector<2x8xf32>
    %c0_26 = arith.constant 0 : index
    %c0_27 = arith.constant 0 : index
    %c0_28 = arith.constant 0 : index
    %44 = vector.load %arg14[%c0_26, %c0_27, %c0_28] : memref<1x2x8xf32, #tpu.memory_space<vmem>>, vector<1x2x8xf32>
    %45 = vector.shape_cast %44 : vector<1x2x8xf32> to vector<2x8xf32>
    %46 = vector.shape_cast %43 : vector<2x8xf32> to vector<1x2x8xf32>
    tpu.vector_store %arg14[%c0_26, %c0_27, %c0_28], %46 {strides = array<i32>} : memref<1x2x8xf32, #tpu.memory_space<vmem>>, vector<1x2x8xf32>,
    %c0_29 = arith.constant 0 : index
    %c0_30 = arith.constant 0 : index
    %47 = vector.load %arg16[%c0_29, %c0_30] : memref<2x1xf32, #tpu.memory_space<vmem>>, vector<2x1xf32>
    %cst_31 = arith.constant dense<0xFF800000> : vector<2xf32>
    %48 = vector.multi_reduction <maximumf>, %43, %cst_31 [1] : vector<2x8xf32> to vector<2xf32>
    %49 = vector.shape_cast %48 : vector<2xf32> to vector<2x1xf32>
    %50 = arith.maximumf %47, %49 : vector<2x1xf32>
    %51 = arith.subf %47, %50 : vector<2x1xf32>
    %52 = math.exp %51 : vector<2x1xf32>
    %53 = vector.broadcast %50 : vector<2x1xf32> to vector<2x8xf32>
    %54 = arith.subf %43, %53 : vector<2x8xf32>
    %55 = math.exp %54 : vector<2x8xf32>
    %c0_32 = arith.constant 0 : index
    %c0_33 = arith.constant 0 : index
    %56 = vector.load %arg17[%c0_32, %c0_33] : memref<2x1xf32, #tpu.memory_space<vmem>>, vector<2x1xf32>
    %57 = arith.mulf %52, %56 : vector<2x1xf32>
    %cst_34 = arith.constant dense<0.000000e+00> : vector<2xf32>
    %58 = vector.multi_reduction <add>, %55, %cst_34 [1] : vector<2x8xf32> to vector<2xf32>
    %59 = vector.shape_cast %58 : vector<2xf32> to vector<2x1xf32>
    %60 = arith.addf %57, %59 : vector<2x1xf32>
    %c0_35 = arith.constant 0 : index
    %c0_36 = arith.constant 0 : index
    %61 = vector.load %arg17[%c0_35, %c0_36] : memref<2x1xf32, #tpu.memory_space<vmem>>, vector<2x1xf32>
    tpu.vector_store %arg17[%c0_35, %c0_36], %60 {strides = array<i32>} : memref<2x1xf32, #tpu.memory_space<vmem>>, vector<2x1xf32>,
    %c0_37 = arith.constant 0 : index
    %c0_38 = arith.constant 0 : index
    %62 = vector.load %arg18[%c0_37, %c0_38] : memref<2x32xf32, #tpu.memory_space<vmem>>, vector<2x32xf32>
    %63 = vector.broadcast %52 : vector<2x1xf32> to vector<2x32xf32>
    %64 = arith.mulf %63, %62 : vector<2x32xf32>
    %65 = vector.shape_cast %55 : vector<2x8xf32> to vector<2x8x1xf32>
    %66 = vector.broadcast %65 : vector<2x8x1xf32> to vector<2x8x32xf32>
    %67 = arith.mulf %66, %17 : vector<2x8x32xf32>
    %cst_39 = arith.constant dense<0.000000e+00> : vector<2x32xf32>
    %68 = vector.multi_reduction <add>, %67, %cst_39 [1] : vector<2x8x32xf32> to vector<2x32xf32>
    %69 = arith.addf %64, %68 : vector<2x32xf32>
    %c0_40 = arith.constant 0 : index
    %c0_41 = arith.constant 0 : index
    %70 = vector.load %arg18[%c0_40, %c0_41] : memref<2x32xf32, #tpu.memory_space<vmem>>, vector<2x32xf32>
    tpu.vector_store %arg18[%c0_40, %c0_41], %69 {strides = array<i32>} : memref<2x32xf32, #tpu.memory_space<vmem>>, vector<2x32xf32>,
    %c0_42 = arith.constant 0 : index
    %c0_43 = arith.constant 0 : index
    %71 = vector.load %arg16[%c0_42, %c0_43] : memref<2x1xf32, #tpu.memory_space<vmem>>, vector<2x1xf32>
    tpu.vector_store %arg16[%c0_42, %c0_43], %50 {strides = array<i32>} : memref<2x1xf32, #tpu.memory_space<vmem>>, vector<2x1xf32>,
    %c0_i32_44 = arith.constant 0 : i32
    %72 = arith.cmpi eq, %arg2, %c0_i32_44 : i32
    %73 = arith.extui %72 : i1 to i32
    %c0_i32_45 = arith.constant 0 : i32
    %74 = arith.cmpi ne, %73, %c0_i32_45 : i32
    scf.if %74 {
      %c0_48 = arith.constant 0 : index
      %c0_49 = arith.constant 0 : index
      %80 = vector.load %arg17[%c0_48, %c0_49] : memref<2x1xf32, #tpu.memory_space<vmem>>, vector<2x1xf32>
      %81 = tpu.reciprocal %80 {approx = true} : vector<2x1xf32> -> vector<2x1xf32>
      %c0_50 = arith.constant 0 : index
      %c0_51 = arith.constant 0 : index
      %82 = vector.load %arg18[%c0_50, %c0_51] : memref<2x32xf32, #tpu.memory_space<vmem>>, vector<2x32xf32>
      %83 = vector.broadcast %81 : vector<2x1xf32> to vector<2x32xf32>
      %84 = arith.mulf %82, %83 : vector<2x32xf32>
      %c0_52 = arith.constant 0 : index
      %c0_53 = arith.constant 0 : index
      %85 = vector.load %arg19[%c0_52, %c0_53] : memref<2x32xf32, #tpu.memory_space<vmem>>, vector<2x32xf32>
      %c0_54 = arith.constant 0 : index
      %c0_55 = arith.constant 0 : index
      %c0_56 = arith.constant 0 : index
      %86 = vector.load %arg12[%c0_54, %c0_55, %c0_56] : memref<1x32x32xf32, #tpu.memory_space<vmem>>, vector<1x32x32xf32>
      %87 = vector.shape_cast %86 : vector<1x32x32xf32> to vector<32x32xf32>
      %cst_57 = arith.constant dense<0.000000e+00> : vector<2x32xf32>
      %88 = tpu.matmul %84, %87, %cst_57 {dimension_numbers = #tpu.dot_dimension_numbers<[1], [0], [0], [1], [0, 0, 1, 1], [], []>} : vector<2x32xf32>, vector<32x32xf32>, vector<2x32xf32> -> vector<2x32xf32>
      %89 = arith.addf %85, %88 : vector<2x32xf32>
      %c0_58 = arith.constant 0 : index
      %c0_59 = arith.constant 0 : index
      %90 = vector.load %arg19[%c0_58, %c0_59] : memref<2x32xf32, #tpu.memory_space<vmem>>, vector<2x32xf32>
      tpu.vector_store %arg19[%c0_58, %c0_59], %89 {strides = array<i32>} : memref<2x32xf32, #tpu.memory_space<vmem>>, vector<2x32xf32>,
    } else {
    }
    %c1_i32 = arith.constant 1 : i32
    %75 = arith.cmpi eq, %arg1, %c1_i32 : i32
    %c0_i32_46 = arith.constant 0 : i32
    %76 = arith.cmpi eq, %arg2, %c0_i32_46 : i32
    %77 = arith.andi %75, %76 : i1
    %78 = arith.extui %77 : i1 to i32
    %c0_i32_47 = arith.constant 0 : i32
    %79 = arith.cmpi ne, %78, %c0_i32_47 : i32
    scf.if %79 {
      %c0_48 = arith.constant 0 : index
      %c0_49 = arith.constant 0 : index
      %80 = vector.load %arg19[%c0_48, %c0_49] : memref<2x32xf32, #tpu.memory_space<vmem>>, vector<2x32xf32>
      %c0_50 = arith.constant 0 : index
      %c0_51 = arith.constant 0 : index
      %81 = vector.load %arg13[%c0_50, %c0_51] : memref<2x32xf32, #tpu.memory_space<vmem>>, vector<2x32xf32>
      tpu.vector_store %arg13[%c0_50, %c0_51], %80 {strides = array<i32>} : memref<2x32xf32, #tpu.memory_space<vmem>>, vector<2x32xf32>,
    } else {
    }
    return
  }
  func.func @transform_0(%arg0: i32, %arg1: i32, %arg2: i32) -> (i32, i32) {
    %c0_i32 = arith.constant 0 : i32
    %c0_i32_0 = arith.constant 0 : i32
    return %arg0, %c0_i32 : i32, i32
  }
  func.func @transform_1(%arg0: i32, %arg1: i32, %arg2: i32) -> (i32, i32, i32) {
    %c0_i32 = arith.constant 0 : i32
    %c0_i32_0 = arith.constant 0 : i32
    return %arg0, %arg2, %c0_i32 : i32, i32, i32
  }
  func.func @transform_2(%arg0: i32, %arg1: i32, %arg2: i32) -> (i32, i32) {
    %c0_i32 = arith.constant 0 : i32
    %c0_i32_0 = arith.constant 0 : i32
    return %arg0, %c0_i32 : i32, i32
  }
  func.func @transform_3(%arg0: i32, %arg1: i32, %arg2: i32) -> (i32, i32, i32) {
    %c0_i32 = arith.constant 0 : i32
    %c0_i32_0 = arith.constant 0 : i32
    %c0_i32_1 = arith.constant 0 : i32
    return %arg1, %c0_i32, %c0_i32_0 : i32, i32, i32
  }
  func.func @transform_4(%arg0: i32, %arg1: i32, %arg2: i32) -> (i32, i32, i32) {
    %c0_i32 = arith.constant 0 : i32
    %c0_i32_0 = arith.constant 0 : i32
    %c0_i32_1 = arith.constant 0 : i32
    return %arg1, %c0_i32, %c0_i32_0 : i32, i32, i32
  }
  func.func @transform_5(%arg0: i32, %arg1: i32, %arg2: i32) -> (i32, i32, i32) {
    %c0_i32 = arith.constant 0 : i32
    %c0_i32_0 = arith.constant 0 : i32
    %c0_i32_1 = arith.constant 0 : i32
    return %arg1, %c0_i32, %c0_i32_0 : i32, i32, i32
  }
  func.func @transform_6(%arg0: i32, %arg1: i32, %arg2: i32) -> (i32, i32, i32) {
    %c0_i32 = arith.constant 0 : i32
    %c0_i32_0 = arith.constant 0 : i32
    %c0_i32_1 = arith.constant 0 : i32
    return %arg1, %c0_i32, %c0_i32_0 : i32, i32, i32
  }
  func.func @transform_7(%arg0: i32, %arg1: i32, %arg2: i32) -> (i32, i32, i32) {
    %c0_i32 = arith.constant 0 : i32
    %c0_i32_0 = arith.constant 0 : i32
    %c0_i32_1 = arith.constant 0 : i32
    return %arg1, %c0_i32, %c0_i32_0 : i32, i32, i32
  }
  func.func @transform_8(%arg0: i32, %arg1: i32, %arg2: i32) -> (i32, i32, i32) {
    %c0_i32 = arith.constant 0 : i32
    %c0_i32_0 = arith.constant 0 : i32
    %c0_i32_1 = arith.constant 0 : i32
    return %arg1, %c0_i32, %c0_i32_0 : i32, i32, i32
  }
  func.func @transform_9(%arg0: i32, %arg1: i32, %arg2: i32) -> (i32, i32, i32) {
    %c0_i32 = arith.constant 0 : i32
    %c0_i32_0 = arith.constant 0 : i32
    %c0_i32_1 = arith.constant 0 : i32
    return %arg1, %c0_i32, %c0_i32_0 : i32, i32, i32
  }
  func.func @transform_10(%arg0: i32, %arg1: i32, %arg2: i32) -> (i32, i32) {
    %c0_i32 = arith.constant 0 : i32
    %c0_i32_0 = arith.constant 0 : i32
    return %arg0, %c0_i32 : i32, i32
  }
  func.func @transform_11(%arg0: i32, %arg1: i32, %arg2: i32) -> (i32, i32, i32) {
    %c0_i32 = arith.constant 0 : i32
    return %arg1, %arg0, %arg2 : i32, i32, i32
  }
}

</mosaic_0001>

<llo_original>
// kernel: tpu_custom_call.1
$region0: #{tpu_custom_call.1}
  #allocation0 [shape = 'u32[]', space=smem, size = 0x4, offset = 0x4, fixed_abs, tag = 'smem constant byte address 0x4 - core index']
  #allocation1 [shape = 'u32[144,128]{1,0:T(1,128)}', space=vmem, size = 0x12000, scoped, tag = 'internal scratch']
  #allocation2 [shape = 'f32[2,32]{1,0:T(2,128)}', space=vmem, size = 0x400, scoped, tag = 'scratch operand']
  #allocation3 [shape = 'f32[2,1]{1,0:T(2,128)}', space=vmem, size = 0x400, scoped, tag = 'scratch operand']
  #allocation4 [shape = 'f32[2,1]{1,0:T(2,128)}', space=vmem, size = 0x400, scoped, tag = 'scratch operand']
  #allocation5 [shape = 'f32[2,32]{1,0:T(2,128)}', space=vmem, size = 0x400, scoped, tag = 'scratch operand']
  #allocation6 [shape = 'f32[2,32]{1,0:T(2,128)}', space=vmem, size = 0x400, scoped, tag = 'scratch operand']
  %s0 = inlined_call_operand.vmem [shape: s32[2,1], index: 0, kind: input, shape index: {}]
  %s1 = inlined_call_operand.hbm [shape: f32[2,8,32], index: 1, kind: input, shape index: {}]
  %s2 = inlined_call_operand.vmem [shape: f32[2,16], index: 2, kind: input, shape index: {}]
  %s3 = inlined_call_operand.hbm [shape: f32[2,16,32], index: 3, kind: input, shape index: {}]
  %s4 = inlined_call_operand.vmem [shape: f32[2,1,32], index: 4, kind: input, shape index: {}]
  %s5 = inlined_call_operand.hbm [shape: f32[2,32,32], index: 5, kind: input, shape index: {}]
  %s6 = inlined_call_operand.hbm [shape: f32[2,32,32], index: 6, kind: input, shape index: {}]
  %s7 = inlined_call_operand.vmem [shape: f32[2,1,32], index: 7, kind: input, shape index: {}]
  %s8 = inlined_call_operand.vmem [shape: f32[2,1,1], index: 8, kind: input, shape index: {}]
  %s9 = inlined_call_operand.hbm [shape: f32[2,32,32], index: 9, kind: input, shape index: {}]
  %s10 = inlined_call_operand.hbm [shape: f32[2,32], index: 10, kind: output, shape index: {0}]
  %s11 = inlined_call_operand.hbm [shape: f32[2,2,8], index: 11, kind: output, shape index: {1}]
  %12 = xla_tuple %s10, %s11
  %s13 = sld [smem:[#allocation0]]
  $region117: #{tpu_custom_call.1} parent=0
    _
  %s15 = ssub.s32 1, %s13
  %s16 = scalar_select 0, %s15, %s13
  $region1: #{tpu_custom_call.1} parent=0
    #allocation7 [shape = 'u8[8192]{0}', space=vmem, size = 0x2000, scoped, tag = 'input window, operand 1, single buffered']
    #allocation8 [shape = 's32[2]{0}', space=sflag, size = 0x8, scoped, tag = 'scoped memory for tpu_custom_call.1']
    #allocation9 [shape = 's32[2]{0}', space=sflag, size = 0x8, scoped, tag = 'scoped memory for tpu_custom_call.1']
    #allocation10 [shape = 'u8[16384]{0}', space=vmem, size = 0x4000, scoped, tag = 'input window, operand 3']
    #allocation11 [shape = 's32[2]{0}', space=sflag, size = 0x8, scoped, tag = 'scoped memory for tpu_custom_call.1']
    #allocation12 [shape = 'u8[32768]{0}', space=vmem, size = 0x8000, scoped, tag = 'input window, operand 5']
    #allocation13 [shape = 'u8[32768]{0}', space=vmem, size = 0x8000, scoped, tag = 'input window, operand 6']
    #allocation14 [shape = 's32[2]{0}', space=sflag, size = 0x8, scoped, tag = 'scoped memory for tpu_custom_call.1']
    #allocation15 [shape = 'u8[32768]{0}', space=vmem, size = 0x8000, scoped, tag = 'input window, operand 9']
    #allocation16 [shape = 'u8[1024]{0}', space=vmem, size = 0x400, scoped, tag = 'output window, operand 0, single buffered']
    #allocation17 [shape = 'u8[2048]{0}', space=vmem, size = 0x800, scoped, tag = 'output window, operand 1']
    #allocation18 [shape = 's32[2]{0}', space=sflag, size = 0x8, scoped, tag = 'scoped memory for tpu_custom_call.1']
    %17 = vsyncpa [#allocation8], 0
    %18 = vsyncpa [#allocation11], 0
    %s19 = scalar_lea.sflag [#allocation11], 1
    %20 = vsyncpa %s19, 0
    %21 = vsyncpa [#allocation14], 0
    %s22 = scalar_lea.sflag [#allocation14], 1
    %23 = vsyncpa %s22, 0
    %24 = vsyncpa [#allocation9], 0
    %25 = vsyncpa [#allocation18], 0
    %s26 = scalar_lea.sflag [#allocation18], 1
    %27 = vsyncpa %s26, 0
    loop: start=0, step=1, limit=4
    $region2: #{tpu_custom_call.1} parent=1 // loop_pre_header
      _
    $region3: #{tpu_custom_call.1} parent=1 // loop_header
      %s29 = sphi 0, %s33
      %p30 = scmp.ge.s32.totalorder %s29, 4
      %s36 = sphi 0, %s55
      %s37 = sphi 0, %s51
      %s38 = sphi 0, %s47
      %s39 = sphi 0, %s36
      %s40 = sphi 0, %s37
      %s41 = sphi 0, %s38
      %s42 = sphi 0, %s39
      %s43 = sphi 0, %s40
      %s44 = sphi 0, %s41
      %s58 = sphi 0, %s60
      %s61 = sphi 0, %s58
      %s62 = sphi 0, %s61
      %s78 = sphi 0, %s62
      %s86 = sphi 0, %s88
      %s89 = sphi 0, %s86
      %s90 = sphi 0, %s89
      %s106 = sphi 0, %s90
      %s112 = sphi 0, %s114
      %s115 = sphi 0, %s112
      %s116 = sphi 0, %s115
      %s132 = sphi 0, %s116
      %s138 = sphi 0, %s140
      %s141 = sphi 0, %s138
      %s142 = sphi 0, %s141
      %s158 = sphi 0, %s142
      %s164 = sphi 0, %s166
      %s167 = sphi 0, %s164
      %s168 = sphi 0, %s167
      %s184 = sphi 0, %s168
      %s190 = sphi 0, %s192
      %s193 = sphi 0, %s190
      %s194 = sphi 0, %s193
      %s210 = sphi 0, %s194
      %s216 = sphi 0, %s218
      %s219 = sphi 0, %s216
      %s220 = sphi 0, %s219
      %s236 = sphi 0, %s220
      %s242 = sphi 0, %s244
      %s245 = sphi 0, %s242
      %s246 = sphi 0, %s245
      %s262 = sphi 0, %s246
      %s268 = sphi 0, %s270
      %s271 = sphi 0, %s268
      %s272 = sphi 0, %s271
      %s288 = sphi 0, %s272
      %s294 = sphi 0, %s296
      %s297 = sphi 0, %s294
      %s298 = sphi 0, %s297
      %s314 = sphi 0, %s298
      %s320 = sphi 0, %s322
      %s323 = sphi 0, %s320
      %s324 = sphi 0, %s323
      %s340 = sphi 0, %s324
      %s350 = sphi 0, %s352
      %s353 = sphi 0, %s350
      %s354 = sphi 0, %s353
      %s370 = sphi 0, %s354
    $region4: #{tpu_custom_call.1} parent=1 // loop_header_branch
      %32 = sbr.rel (%p30) target = $region8
    $region5: #{tpu_custom_call.1} parent=1 // loop_body
      %s34 = ssub.s32 %s29, 1
      %s35 = ssub.s32 %s29, 2
      %s45 = sadd.s32 1, %s38
      %p46 = scmp.ge.s32.totalorder %s45, 1
      %s47 = scalar_select %p46, 0, %s45
      %s48 = sadd.s32 1, %s37
      %s49 = scalar_select %p46, %s48, %s37
      %p50 = scmp.ge.s32.totalorder %s49, 2
      %s51 = scalar_select %p50, 0, %s49
      %s52 = sadd.s32 1, %s36
      %s53 = scalar_select %p50, %s52, %s36
      %p54 = scmp.ge.s32.totalorder %s53, 1
      %s55 = scalar_select %p54, 0, %s53
      %s56 = ssub.s32 %s36, %s55
      %p57 = scmp.eq.s32.totalorder %s56, 0
      %s59 = sadd.s32 %s58, 1
      %s60 = scalar_select %p57, %s58, %s59
      %p63 = pneg %p57
      %p64 = scmp.eq.s32.totalorder %s29, 1
      %p65 = por %p63, %p64
      %p66 = scmp.ne.s32.totalorder %s58, %s61
      %p67 = scmp.eq.s32.totalorder %s29, 0
      %p68 = por %p66, %p67
      %p69 = scmp.ne.s32.totalorder %s58, %s61
      %p70 = scmp.eq.s32.totalorder %s34, 1
      %p71 = por %p69, %p70
      %p72 = scmp.ne.s32.totalorder %s61, %s62
      %p73 = scmp.eq.s32.totalorder %s34, 0
      %p74 = por %p72, %p73
      %p75 = scmp.ne.s32.totalorder %s61, %s62
      %p76 = scmp.eq.s32.totalorder %s35, 1
      %p77 = por %p75, %p76
      %p79 = scmp.ne.s32.totalorder %s62, %s78
      %p80 = scmp.eq.s32.totalorder %s35, 0
      %p81 = por %p79, %p80
      %s82 = ssub.s32 %s36, %s55
      %s83 = ssub.s32 %s38, %s47
      %s84 = sor.u32 %s82, %s83
      %p85 = scmp.eq.s32.totalorder %s84, 0
      %s87 = sadd.s32 %s86, 1
      %s88 = scalar_select %p85, %s86, %s87
      %p91 = pneg %p85
      %p92 = scmp.eq.s32.totalorder %s29, 1
      %p93 = por %p91, %p92
      %p94 = scmp.ne.s32.totalorder %s86, %s89
      %p95 = scmp.eq.s32.totalorder %s29, 0
      %p96 = por %p94, %p95
      %p97 = scmp.ne.s32.totalorder %s86, %s89
      %p98 = scmp.eq.s32.totalorder %s34, 1
      %p99 = por %p97, %p98
      %p100 = scmp.ne.s32.totalorder %s89, %s90
      %p101 = scmp.eq.s32.totalorder %s34, 0
      %p102 = por %p100, %p101
      %p103 = scmp.ne.s32.totalorder %s89, %s90
      %p104 = scmp.eq.s32.totalorder %s35, 1
      %p105 = por %p103, %p104
      %p107 = scmp.ne.s32.totalorder %s90, %s106
      %p108 = scmp.eq.s32.totalorder %s35, 0
      %p109 = por %p107, %p108
      %s110 = ssub.s32 %s36, %s55
      %p111 = scmp.eq.s32.totalorder %s110, 0
      %s113 = sadd.s32 %s112, 1
      %s114 = scalar_select %p111, %s112, %s113
      %p117 = pneg %p111
      %p118 = scmp.eq.s32.totalorder %s29, 1
      %p119 = por %p117, %p118
      %p120 = scmp.ne.s32.totalorder %s112, %s115
      %p121 = scmp.eq.s32.totalorder %s29, 0
      %p122 = por %p120, %p121
      %p123 = scmp.ne.s32.totalorder %s112, %s115
      %p124 = scmp.eq.s32.totalorder %s34, 1
      %p125 = por %p123, %p124
      %p126 = scmp.ne.s32.totalorder %s115, %s116
      %p127 = scmp.eq.s32.totalorder %s34, 0
      %p128 = por %p126, %p127
      %p129 = scmp.ne.s32.totalorder %s115, %s116
      %p130 = scmp.eq.s32.totalorder %s35, 1
      %p131 = por %p129, %p130
      %p133 = scmp.ne.s32.totalorder %s116, %s132
      %p134 = scmp.eq.s32.totalorder %s35, 0
      %p135 = por %p133, %p134
      %s136 = ssub.s32 %s37, %s51
      %p137 = scmp.eq.s32.totalorder %s136, 0
      %s139 = sadd.s32 %s138, 1
      %s140 = scalar_select %p137, %s138, %s139
      %p143 = pneg %p137
      %p144 = scmp.eq.s32.totalorder %s29, 1
      %p145 = por %p143, %p144
      %p146 = scmp.ne.s32.totalorder %s138, %s141
      %p147 = scmp.eq.s32.totalorder %s29, 0
      %p148 = por %p146, %p147
      %p149 = scmp.ne.s32.totalorder %s138, %s141
      %p150 = scmp.eq.s32.totalorder %s34, 1
      %p151 = por %p149, %p150
      %p152 = scmp.ne.s32.totalorder %s141, %s142
      %p153 = scmp.eq.s32.totalorder %s34, 0
      %p154 = por %p152, %p153
      %p155 = scmp.ne.s32.totalorder %s141, %s142
      %p156 = scmp.eq.s32.totalorder %s35, 1
      %p157 = por %p155, %p156
      %p159 = scmp.ne.s32.totalorder %s142, %s158
      %p160 = scmp.eq.s32.totalorder %s35, 0
      %p161 = por %p159, %p160
      %s162 = ssub.s32 %s37, %s51
      %p163 = scmp.eq.s32.totalorder %s162, 0
      %s165 = sadd.s32 %s164, 1
      %s166 = scalar_select %p163, %s164, %s165
      %p169 = pneg %p163
      %p170 = scmp.eq.s32.totalorder %s29, 1
      %p171 = por %p169, %p170
      %p172 = scmp.ne.s32.totalorder %s164, %s167
      %p173 = scmp.eq.s32.totalorder %s29, 0
      %p174 = por %p172, %p173
      %p175 = scmp.ne.s32.totalorder %s164, %s167
      %p176 = scmp.eq.s32.totalorder %s34, 1
      %p177 = por %p175, %p176
      %p178 = scmp.ne.s32.totalorder %s167, %s168
      %p179 = scmp.eq.s32.totalorder %s34, 0
      %p180 = por %p178, %p179
      %p181 = scmp.ne.s32.totalorder %s167, %s168
      %p182 = scmp.eq.s32.totalorder %s35, 1
      %p183 = por %p181, %p182
      %p185 = scmp.ne.s32.totalorder %s168, %s184
      %p186 = scmp.eq.s32.totalorder %s35, 0
      %p187 = por %p185, %p186
      %s188 = ssub.s32 %s37, %s51
      %p189 = scmp.eq.s32.totalorder %s188, 0
      %s191 = sadd.s32 %s190, 1
      %s192 = scalar_select %p189, %s190, %s191
      %p195 = pneg %p189
      %p196 = scmp.eq.s32.totalorder %s29, 1
      %p197 = por %p195, %p196
      %p198 = scmp.ne.s32.totalorder %s190, %s193
      %p199 = scmp.eq.s32.totalorder %s29, 0
      %p200 = por %p198, %p199
      %p201 = scmp.ne.s32.totalorder %s190, %s193
      %p202 = scmp.eq.s32.totalorder %s34, 1
      %p203 = por %p201, %p202
      %p204 = scmp.ne.s32.totalorder %s193, %s194
      %p205 = scmp.eq.s32.totalorder %s34, 0
      %p206 = por %p204, %p205
      %p207 = scmp.ne.s32.totalorder %s193, %s194
      %p208 = scmp.eq.s32.totalorder %s35, 1
      %p209 = por %p207, %p208
      %p211 = scmp.ne.s32.totalorder %s194, %s210
      %p212 = scmp.eq.s32.totalorder %s35, 0
      %p213 = por %p211, %p212
      %s214 = ssub.s32 %s37, %s51
      %p215 = scmp.eq.s32.totalorder %s214, 0
      %s217 = sadd.s32 %s216, 1
      %s218 = scalar_select %p215, %s216, %s217
      %p221 = pneg %p215
      %p222 = scmp.eq.s32.totalorder %s29, 1
      %p223 = por %p221, %p222
      %p224 = scmp.ne.s32.totalorder %s216, %s219
      %p225 = scmp.eq.s32.totalorder %s29, 0
      %p226 = por %p224, %p225
      %p227 = scmp.ne.s32.totalorder %s216, %s219
      %p228 = scmp.eq.s32.totalorder %s34, 1
      %p229 = por %p227, %p228
      %p230 = scmp.ne.s32.totalorder %s219, %s220
      %p231 = scmp.eq.s32.totalorder %s34, 0
      %p232 = por %p230, %p231
      %p233 = scmp.ne.s32.totalorder %s219, %s220
      %p234 = scmp.eq.s32.totalorder %s35, 1
      %p235 = por %p233, %p234
      %p237 = scmp.ne.s32.totalorder %s220, %s236
      %p238 = scmp.eq.s32.totalorder %s35, 0
      %p239 = por %p237, %p238
      %s240 = ssub.s32 %s37, %s51
      %p241 = scmp.eq.s32.totalorder %s240, 0
      %s243 = sadd.s32 %s242, 1
      %s244 = scalar_select %p241, %s242, %s243
      %p247 = pneg %p241
      %p248 = scmp.eq.s32.totalorder %s29, 1
      %p249 = por %p247, %p248
      %p250 = scmp.ne.s32.totalorder %s242, %s245
      %p251 = scmp.eq.s32.totalorder %s29, 0
      %p252 = por %p250, %p251
      %p253 = scmp.ne.s32.totalorder %s242, %s245
      %p254 = scmp.eq.s32.totalorder %s34, 1
      %p255 = por %p253, %p254
      %p256 = scmp.ne.s32.totalorder %s245, %s246
      %p257 = scmp.eq.s32.totalorder %s34, 0
      %p258 = por %p256, %p257
      %p259 = scmp.ne.s32.totalorder %s245, %s246
      %p260 = scmp.eq.s32.totalorder %s35, 1
      %p261 = por %p259, %p260
      %p263 = scmp.ne.s32.totalorder %s246, %s262
      %p264 = scmp.eq.s32.totalorder %s35, 0
      %p265 = por %p263, %p264
      %s266 = ssub.s32 %s37, %s51
      %p267 = scmp.eq.s32.totalorder %s266, 0
      %s269 = sadd.s32 %s268, 1
      %s270 = scalar_select %p267, %s268, %s269
      %p273 = pneg %p267
      %p274 = scmp.eq.s32.totalorder %s29, 1
      %p275 = por %p273, %p274
      %p276 = scmp.ne.s32.totalorder %s268, %s271
      %p277 = scmp.eq.s32.totalorder %s29, 0
      %p278 = por %p276, %p277
      %p279 = scmp.ne.s32.totalorder %s268, %s271
      %p280 = scmp.eq.s32.totalorder %s34, 1
      %p281 = por %p279, %p280
      %p282 = scmp.ne.s32.totalorder %s271, %s272
      %p283 = scmp.eq.s32.totalorder %s34, 0
      %p284 = por %p282, %p283
      %p285 = scmp.ne.s32.totalorder %s271, %s272
      %p286 = scmp.eq.s32.totalorder %s35, 1
      %p287 = por %p285, %p286
      %p289 = scmp.ne.s32.totalorder %s272, %s288
      %p290 = scmp.eq.s32.totalorder %s35, 0
      %p291 = por %p289, %p290
      %s292 = ssub.s32 %s37, %s51
      %p293 = scmp.eq.s32.totalorder %s292, 0
      %s295 = sadd.s32 %s294, 1
      %s296 = scalar_select %p293, %s294, %s295
      %p299 = pneg %p293
      %p300 = scmp.eq.s32.totalorder %s29, 1
      %p301 = por %p299, %p300
      %p302 = scmp.ne.s32.totalorder %s294, %s297
      %p303 = scmp.eq.s32.totalorder %s29, 0
      %p304 = por %p302, %p303
      %p305 = scmp.ne.s32.totalorder %s294, %s297
      %p306 = scmp.eq.s32.totalorder %s34, 1
      %p307 = por %p305, %p306
      %p308 = scmp.ne.s32.totalorder %s297, %s298
      %p309 = scmp.eq.s32.totalorder %s34, 0
      %p310 = por %p308, %p309
      %p311 = scmp.ne.s32.totalorder %s297, %s298
      %p312 = scmp.eq.s32.totalorder %s35, 1
      %p313 = por %p311, %p312
      %p315 = scmp.ne.s32.totalorder %s298, %s314
      %p316 = scmp.eq.s32.totalorder %s35, 0
      %p317 = por %p315, %p316
      %s318 = ssub.s32 %s36, %s55
      %p319 = scmp.eq.s32.totalorder %s318, 0
      %s321 = sadd.s32 %s320, 1
      %s322 = scalar_select %p319, %s320, %s321
      %p325 = pneg %p319
      %p326 = scmp.eq.s32.totalorder %s29, 1
      %p327 = por %p325, %p326
      %p328 = scmp.ne.s32.totalorder %s320, %s323
      %p329 = scmp.eq.s32.totalorder %s29, 0
      %p330 = por %p328, %p329
      %p331 = scmp.ne.s32.totalorder %s320, %s323
      %p332 = scmp.eq.s32.totalorder %s34, 1
      %p333 = por %p331, %p332
      %p334 = scmp.ne.s32.totalorder %s323, %s324
      %p335 = scmp.eq.s32.totalorder %s34, 0
      %p336 = por %p334, %p335
      %p337 = scmp.ne.s32.totalorder %s323, %s324
      %p338 = scmp.eq.s32.totalorder %s35, 1
      %p339 = por %p337, %p338
      %p341 = scmp.ne.s32.totalorder %s324, %s340
      %p342 = scmp.eq.s32.totalorder %s35, 0
      %p343 = por %p341, %p342
      %s344 = ssub.s32 %s37, %s51
      %s345 = ssub.s32 %s36, %s55
      %s346 = sor.u32 %s344, %s345
      %s347 = ssub.s32 %s38, %s47
      %s348 = sor.u32 %s346, %s347
      %p349 = scmp.eq.s32.totalorder %s348, 0
      %s351 = sadd.s32 %s350, 1
      %s352 = scalar_select %p349, %s350, %s351
      %p355 = pneg %p349
      %p356 = scmp.eq.s32.totalorder %s29, 1
      %p357 = por %p355, %p356
      %p358 = scmp.ne.s32.totalorder %s350, %s353
      %p359 = scmp.eq.s32.totalorder %s29, 0
      %p360 = por %p358, %p359
      %p361 = scmp.ne.s32.totalorder %s350, %s353
      %p362 = scmp.eq.s32.totalorder %s34, 1
      %p363 = por %p361, %p362
      %p364 = scmp.ne.s32.totalorder %s353, %s354
      %p365 = scmp.eq.s32.totalorder %s34, 0
      %p366 = por %p364, %p365
      %p367 = scmp.ne.s32.totalorder %s353, %s354
      %p368 = scmp.eq.s32.totalorder %s35, 1
      %p369 = por %p367, %p368
      %p371 = scmp.ne.s32.totalorder %s354, %s370
      %p372 = scmp.eq.s32.totalorder %s35, 0
      %p373 = por %p371, %p372
      %p374 = scmp.le.s32.totalorder 1, %s29
      %p375 = scmp.lt.s32.totalorder %s29, 3
      %p376 = pnand %p374, %p375
      %p377 = pneg %p376
      // Predicated region
      $region9: #{tpu_custom_call.1} parent=5 // pred_check
        _
      $region10: #{tpu_custom_call.1} parent=5 // pred_check_branch
        %379 = sbr.rel (%p376) target = $region12
      $region11: #{tpu_custom_call.1} parent=5 // pred_region
        %s380 = ssub.s32 %s29, 1
        // Predicated region
        $region13: #{tpu_custom_call.1} parent=11 // pred_check
          %p381 = pneg %p74
        $region14: #{tpu_custom_call.1} parent=11 // pred_check_branch
          %383 = sbr.rel (%p381) target = $region16
        $region15: #{tpu_custom_call.1} parent=11 // pred_region
          %p384 = scmp.lt.s32.totalorder %s39, 0
          %s385 = scalar_select %p384, %s39, 0
          %s386 = smul.addr %s385, 2
          %s387 = scalar_lea.vmem %s0, %s386
        $region16: #{tpu_custom_call.1} parent=11 // pred_fallthru
          _
        // Predicated region
        $region17: #{tpu_custom_call.1} parent=11 // pred_check
          %p388 = pneg %p102
        $region18: #{tpu_custom_call.1} parent=11 // pred_check_branch
          %390 = sbr.rel (%p388) target = $region20
        $region19: #{tpu_custom_call.1} parent=11 // pred_region
          %s391 = smul.u32 2, %s39
          %s393 = ssub.s32 256, 256
          %394 = vsyncadd [#allocation8], %s393
          %s395 = sadd.s32 %s41, %s391
          %s396 = smul.addr %s395, 128
          %s397 = scalar_lea.hbm %s1, %s396
          %s398 = sshll.u32 [#allocation7], 4
          %s399 = int_to_ptr.vmem [resolvable:$true] %s398
          %404 = dma.hbm_to_vmem [thread:$0]  %s397, 256, %s399, [#allocation8], 128, 128, 8
        $region20: #{tpu_custom_call.1} parent=11 // pred_fallthru
          _
        // Predicated region
        $region21: #{tpu_custom_call.1} parent=11 // pred_check
          %p405 = pneg %p128
        $region22: #{tpu_custom_call.1} parent=11 // pred_check_branch
          %407 = sbr.rel (%p405) target = $region24
        $region23: #{tpu_custom_call.1} parent=11 // pred_region
          %p408 = scmp.lt.s32.totalorder %s39, 0
          %s409 = scalar_select %p408, %s39, 0
          %s410 = smul.addr %s409, 2
          %s411 = scalar_lea.vmem %s2, %s410
        $region24: #{tpu_custom_call.1} parent=11 // pred_fallthru
          _
      $region12: #{tpu_custom_call.1} parent=5 // pred_fallthru
        _
      %p412 = scmp.lt.s32.totalorder %s29, 2
      // Predicated region
      $region25: #{tpu_custom_call.1} parent=5 // pred_check
        %p413 = pneg %p412
      $region26: #{tpu_custom_call.1} parent=5 // pred_check_branch
        %415 = sbr.rel (%p413) target = $region28
      $region27: #{tpu_custom_call.1} parent=5 // pred_region
        // Predicated region
        $region29: #{tpu_custom_call.1} parent=27 // pred_check
          %p416 = pneg %p148
        $region30: #{tpu_custom_call.1} parent=27 // pred_check_branch
          %418 = sbr.rel (%p416) target = $region32
        $region31: #{tpu_custom_call.1} parent=27 // pred_region
          %s419 = sand.u32 %s29, 1
          %s420 = scalar_lea.sflag [#allocation11], %s419
          %s421 = sand.u32 %s138, 1
          %s422 = smul.addr %s421, 16
          %s423 = scalar_lea.vmem [#allocation10], %s422
          %s425 = ssub.s32 256, 256
          %426 = vsyncadd %s420, %s425
          %s427 = smul.addr %s37, 2
          %s428 = smul.addr %s427, 128
          %s429 = scalar_lea.hbm %s3, %s428
          %s430 = sshll.u32 %s423, 4
          %s431 = int_to_ptr.vmem [resolvable:$true] %s430
          %436 = dma.hbm_to_vmem [thread:$0]  %s429, 256, %s431, %s420, 128, 128, 8
        $region32: #{tpu_custom_call.1} parent=27 // pred_fallthru
          _
        // Predicated region
        $region33: #{tpu_custom_call.1} parent=27 // pred_check
          %p437 = pneg %p174
        $region34: #{tpu_custom_call.1} parent=27 // pred_check_branch
          %439 = sbr.rel (%p437) target = $region36
        $region35: #{tpu_custom_call.1} parent=27 // pred_region
          %p440 = scmp.lt.s32.totalorder %s37, 1
          %s441 = scalar_select %p440, %s37, 1
          %s442 = scalar_lea.vmem %s4, %s441
        $region36: #{tpu_custom_call.1} parent=27 // pred_fallthru
          _
        // Predicated region
        $region37: #{tpu_custom_call.1} parent=27 // pred_check
          %p443 = pneg %p200
        $region38: #{tpu_custom_call.1} parent=27 // pred_check_branch
          %445 = sbr.rel (%p443) target = $region40
        $region39: #{tpu_custom_call.1} parent=27 // pred_region
          %s446 = sand.u32 %s29, 1
          %s447 = scalar_lea.sflag [#allocation11], %s446
          %s448 = sand.u32 %s190, 1
          %s449 = smul.addr %s448, 32
          %s450 = scalar_lea.vmem [#allocation12], %s449
          %s452 = ssub.s32 512, 512
          %453 = vsyncadd %s447, %s452
          %s454 = smul.addr %s37, 4
          %s455 = smul.addr %s454, 128
          %s456 = scalar_lea.hbm %s5, %s455
          %s457 = sshll.u32 %s450, 4
          %s458 = int_to_ptr.vmem [resolvable:$true] %s457
          %463 = dma.hbm_to_vmem [thread:$0]  %s456, 512, %s458, %s447, 128, 128, 8
        $region40: #{tpu_custom_call.1} parent=27 // pred_fallthru
          _
        // Predicated region
        $region41: #{tpu_custom_call.1} parent=27 // pred_check
          %p464 = pneg %p226
        $region42: #{tpu_custom_call.1} parent=27 // pred_check_branch
          %466 = sbr.rel (%p464) target = $region44
        $region43: #{tpu_custom_call.1} parent=27 // pred_region
          %s467 = sand.u32 %s29, 1
          %s468 = scalar_lea.sflag [#allocation14], %s467
          %s469 = sand.u32 %s216, 1
          %s470 = smul.addr %s469, 32
          %s471 = scalar_lea.vmem [#allocation13], %s470
          %s473 = ssub.s32 512, 512
          %474 = vsyncadd %s468, %s473
          %s475 = smul.addr %s37, 4
          %s476 = smul.addr %s475, 128
          %s477 = scalar_lea.hbm %s6, %s476
          %s478 = sshll.u32 %s471, 4
          %s479 = int_to_ptr.vmem [resolvable:$true] %s478
          %484 = dma.hbm_to_vmem [thread:$0]  %s477, 512, %s479, %s468, 128, 128, 8
        $region44: #{tpu_custom_call.1} parent=27 // pred_fallthru
          _
        // Predicated region
        $region45: #{tpu_custom_call.1} parent=27 // pred_check
          %p485 = pneg %p252
        $region46: #{tpu_custom_call.1} parent=27 // pred_check_branch
          %487 = sbr.rel (%p485) target = $region48
        $region47: #{tpu_custom_call.1} parent=27 // pred_region
          %p488 = scmp.lt.s32.totalorder %s37, 1
          %s489 = scalar_select %p488, %s37, 1
          %s490 = scalar_lea.vmem %s7, %s489
        $region48: #{tpu_custom_call.1} parent=27 // pred_fallthru
          _
        // Predicated region
        $region49: #{tpu_custom_call.1} parent=27 // pred_check
          %p491 = pneg %p278
        $region50: #{tpu_custom_call.1} parent=27 // pred_check_branch
          %493 = sbr.rel (%p491) target = $region52
        $region51: #{tpu_custom_call.1} parent=27 // pred_region
          %p494 = scmp.lt.s32.totalorder %s37, 1
          %s495 = scalar_select %p494, %s37, 1
          %s496 = scalar_lea.vmem %s8, %s495
        $region52: #{tpu_custom_call.1} parent=27 // pred_fallthru
          _
        // Predicated region
        $region53: #{tpu_custom_call.1} parent=27 // pred_check
          %p497 = pneg %p304
        $region54: #{tpu_custom_call.1} parent=27 // pred_check_branch
          %499 = sbr.rel (%p497) target = $region56
        $region55: #{tpu_custom_call.1} parent=27 // pred_region
          %s500 = sand.u32 %s29, 1
          %s501 = scalar_lea.sflag [#allocation14], %s500
          %s502 = sand.u32 %s294, 1
          %s503 = smul.addr %s502, 32
          %s504 = scalar_lea.vmem [#allocation15], %s503
          %s506 = ssub.s32 512, 512
          %507 = vsyncadd %s501, %s506
          %s508 = smul.addr %s37, 4
          %s509 = smul.addr %s508, 128
          %s510 = scalar_lea.hbm %s9, %s509
          %s511 = sshll.u32 %s504, 4
          %s512 = int_to_ptr.vmem [resolvable:$true] %s511
          %517 = dma.hbm_to_vmem [thread:$0]  %s510, 512, %s512, %s501, 128, 128, 8
        $region56: #{tpu_custom_call.1} parent=27 // pred_fallthru
          _
      $region28: #{tpu_custom_call.1} parent=5 // pred_fallthru
        _
      %p518 = scmp.le.s32.totalorder 1, %s29
      %p519 = scmp.lt.s32.totalorder %s29, 3
      %p520 = pnand %p518, %p519
      %p521 = pneg %p520
      // Predicated region
      $region57: #{tpu_custom_call.1} parent=5 // pred_check
        _
      $region58: #{tpu_custom_call.1} parent=5 // pred_check_branch
        %523 = sbr.rel (%p520) target = $region60
      $region59: #{tpu_custom_call.1} parent=5 // pred_region
        %s524 = ssub.s32 %s29, 1
        // Predicated region
        $region61: #{tpu_custom_call.1} parent=59 // pred_check
          %p525 = pneg %p102
        $region62: #{tpu_custom_call.1} parent=59 // pred_check_branch
          %527 = sbr.rel (%p525) target = $region64
        $region63: #{tpu_custom_call.1} parent=59 // pred_region
          %528 = dma.done [#allocation8], 256
        $region64: #{tpu_custom_call.1} parent=59 // pred_fallthru
          _
        %s529 = sand.u32 %s34, 1
        %s530 = scalar_lea.sflag [#allocation11], %s529
        %s531 = sand.u32 %s141, 1
        %s532 = smul.addr %s531, 16
        %s533 = scalar_lea.vmem [#allocation10], %s532
        // Predicated region
        $region65: #{tpu_custom_call.1} parent=59 // pred_check
          %p534 = pneg %p154
        $region66: #{tpu_custom_call.1} parent=59 // pred_check_branch
          %536 = sbr.rel (%p534) target = $region68
        $region67: #{tpu_custom_call.1} parent=59 // pred_region
          %537 = dma.done %s530, 256
        $region68: #{tpu_custom_call.1} parent=59 // pred_fallthru
          _
        %s538 = sand.u32 %s34, 1
        %s539 = scalar_lea.sflag [#allocation11], %s538
        %s540 = sand.u32 %s193, 1
        %s541 = smul.addr %s540, 32
        %s542 = scalar_lea.vmem [#allocation12], %s541
        // Predicated region
        $region69: #{tpu_custom_call.1} parent=59 // pred_check
          %p543 = pneg %p206
        $region70: #{tpu_custom_call.1} parent=59 // pred_check_branch
          %545 = sbr.rel (%p543) target = $region72
        $region71: #{tpu_custom_call.1} parent=59 // pred_region
          %546 = dma.done %s539, 512
        $region72: #{tpu_custom_call.1} parent=59 // pred_fallthru
          _
        %s547 = sand.u32 %s34, 1
        %s548 = scalar_lea.sflag [#allocation14], %s547
        %s549 = sand.u32 %s219, 1
        %s550 = smul.addr %s549, 32
        %s551 = scalar_lea.vmem [#allocation13], %s550
        // Predicated region
        $region73: #{tpu_custom_call.1} parent=59 // pred_check
          %p552 = pneg %p232
        $region74: #{tpu_custom_call.1} parent=59 // pred_check_branch
          %554 = sbr.rel (%p552) target = $region76
        $region75: #{tpu_custom_call.1} parent=59 // pred_region
          %555 = dma.done %s548, 512
        $region76: #{tpu_custom_call.1} parent=59 // pred_fallthru
          _
        %s556 = sand.u32 %s34, 1
        %s557 = scalar_lea.sflag [#allocation14], %s556
        %s558 = sand.u32 %s297, 1
        %s559 = smul.addr %s558, 32
        %s560 = scalar_lea.vmem [#allocation15], %s559
        // Predicated region
        $region77: #{tpu_custom_call.1} parent=59 // pred_check
          %p561 = pneg %p310
        $region78: #{tpu_custom_call.1} parent=59 // pred_check_branch
          %563 = sbr.rel (%p561) target = $region80
        $region79: #{tpu_custom_call.1} parent=59 // pred_region
          %564 = dma.done %s557, 512
        $region80: #{tpu_custom_call.1} parent=59 // pred_fallthru
          _
        %p565 = scmp.lt.s32.totalorder %s39, 0
        %s566 = scalar_select %p565, %s39, 0
        %s567 = smul.addr %s566, 2
        %s568 = scalar_lea.vmem %s0, %s567
        %p569 = pneg %p74
        %p570 = pneg %p71
        %p571 = pneg %p102
        %p572 = pneg %p99
        %p573 = scmp.lt.s32.totalorder %s39, 0
        %s574 = scalar_select %p573, %s39, 0
        %s575 = smul.addr %s574, 2
        %s576 = scalar_lea.vmem %s2, %s575
        %p577 = pneg %p128
        %p578 = pneg %p125
        %s579 = sand.u32 %s34, 1
        %s580 = scalar_lea.sflag [#allocation11], %s579
        %s581 = sand.u32 %s141, 1
        %s582 = smul.addr %s581, 16
        %s583 = scalar_lea.vmem [#allocation10], %s582
        %p584 = pneg %p154
        %p585 = pneg %p151
        %p586 = scmp.lt.s32.totalorder %s40, 1
        %s587 = scalar_select %p586, %s40, 1
        %s588 = scalar_lea.vmem %s4, %s587
        %p589 = pneg %p180
        %p590 = pneg %p177
        %s591 = sand.u32 %s34, 1
        %s592 = scalar_lea.sflag [#allocation11], %s591
        %s593 = sand.u32 %s193, 1
        %s594 = smul.addr %s593, 32
        %s595 = scalar_lea.vmem [#allocation12], %s594
        %p596 = pneg %p206
        %p597 = pneg %p203
        %s598 = sand.u32 %s34, 1
        %s599 = scalar_lea.sflag [#allocation14], %s598
        %s600 = sand.u32 %s219, 1
        %s601 = smul.addr %s600, 32
        %s602 = scalar_lea.vmem [#allocation13], %s601
        %p603 = pneg %p232
        %p604 = pneg %p229
        %p605 = scmp.lt.s32.totalorder %s40, 1
        %s606 = scalar_select %p605, %s40, 1
        %s607 = scalar_lea.vmem %s7, %s606
        %p608 = pneg %p258
        %p609 = pneg %p255
        %p610 = scmp.lt.s32.totalorder %s40, 1
        %s611 = scalar_select %p610, %s40, 1
        %s612 = scalar_lea.vmem %s8, %s611
        %p613 = pneg %p284
        %p614 = pneg %p281
        %s615 = sand.u32 %s34, 1
        %s616 = scalar_lea.sflag [#allocation14], %s615
        %s617 = sand.u32 %s297, 1
        %s618 = smul.addr %s617, 32
        %s619 = scalar_lea.vmem [#allocation15], %s618
        %p620 = pneg %p310
        %p621 = pneg %p307
        %p622 = pneg %p336
        %p623 = pneg %p333
        %p624 = pneg %p366
        %p625 = pneg %p363
        %s626 = sand.u32 %s353, 1
        %s627 = scalar_lea.sflag [#allocation18], %s626
        %s628 = sand.u32 %s353, 1
        %s629 = smul.addr %s628, 2
        %s630 = scalar_lea.vmem [#allocation17], %s629
        %p631 = scmp.lt.s32.totalorder %s39, 0
        %s632 = scalar_select %p631, %s39, 0
        %s633 = smul.addr %s632, 2
        %s634 = scalar_lea.vmem %s0, %s633
        %s635 = smul.u32 2, %s39
        %p636 = scmp.lt.s32.totalorder %s39, 0
        %s637 = scalar_select %p636, %s39, 0
        %s638 = smul.addr %s637, 2
        %s639 = scalar_lea.vmem %s2, %s638
        %p640 = scmp.lt.s32.totalorder %s40, 1
        %s641 = scalar_select %p640, %s40, 1
        %s642 = scalar_lea.vmem %s4, %s641
        %p643 = scmp.lt.s32.totalorder %s40, 1
        %s644 = scalar_select %p643, %s40, 1
        %s645 = scalar_lea.vmem %s7, %s644
        %p646 = scmp.lt.s32.totalorder %s40, 1
        %s647 = scalar_select %p646, %s40, 1
        %s648 = scalar_lea.vmem %s8, %s647
        %p649 = scmp.eq.s32.totalorder %s40, 0
        %p650 = scmp.eq.s32.totalorder %s41, 0
        %p651 = pnand %p649, %p650
        %p652 = pneg %p651
        // Predicated region
        $region81: #{tpu_custom_call.1} parent=59 // pred_check
          _
        $region82: #{tpu_custom_call.1} parent=59 // pred_check_branch
          %654 = sbr.rel (%p651) target = $region84
        $region83: #{tpu_custom_call.1} parent=59 // pred_region
          %vm655 = vcmask 254976
          %656 = vst.msk [vmem:[#allocation6] sm:$0x3] %vm655, 0.0
        $region84: #{tpu_custom_call.1} parent=59 // pred_fallthru
          _
        // Predicated region
        $region85: #{tpu_custom_call.1} parent=59 // pred_check
          %p657 = pneg %p650
        $region86: #{tpu_custom_call.1} parent=59 // pred_check_branch
          %659 = sbr.rel (%p657) target = $region88
        $region87: #{tpu_custom_call.1} parent=59 // pred_region
          %v660 = vld [vmem:[%s639] sm:$0x3]
          %v661 = vld [vmem:[%s533] sm:$0xff]
          %v662 = vld [vmem:[%s533 + $0x8] sm:$0xff]
          %v663 = vld [vmem:[%s642] sm:$0x1]
          %v665 = vlaneseq
          %v666 = vshrl.u32 %v665, 7
          %v667 = vsub.s32 0, %v666
          %v668 = vrot.slane %v663, %v667
          %vm670 = vcmask 130048
          %v672 = vsel %vm670, %v660, 0
          %674 = vmatprep.subr.mxu0 0.0
          %675 = vmatpush1.msra.mxu0 %v661
          %676 = vmatprep.subr.mxu0 0.0
          %677 = vmatpush1.msra.mxu0 %v662
          %678 = vmatprep.subr.mxu0 0.0
          %679 = vmatpush1.msra.mxu0 0.0
          %680 = vmatprep.subr.mxu0 0.0
          %681 = vmatpush1.msra.mxu0 0.0
          %682 = vmatprep.subr.mxu0 0.0
          %683 = vmatpush1.msra.mxu0 0.0
          %684 = vmatprep.subr.mxu0 0.0
          %685 = vmatpush1.msra.mxu0 0.0
          %686 = vmatprep.subr.mxu0 0.0
          %687 = vmatpush1.msra.mxu0 0.0
          %688 = vmatprep.subr.mxu0 0.0
          %689 = vmatpush1.msra.mxu0 0.0
          %690 = vmatprep.subr.mxu0 0.0
          %691 = vmatpush1.msra.mxu0 0.0
          %692 = vmatprep.subr.mxu0 0.0
          %693 = vmatpush1.msra.mxu0 0.0
          %694 = vmatprep.subr.mxu0 0.0
          %695 = vmatpush1.msra.mxu0 0.0
          %696 = vmatprep.subr.mxu0 0.0
          %697 = vmatpush1.msra.mxu0 0.0
          %698 = vmatprep.subr.mxu0 0.0
          %699 = vmatpush1.msra.mxu0 0.0
          %700 = vmatprep.subr.mxu0 0.0
          %701 = vmatpush1.msra.mxu0 0.0
          %702 = vmatprep.subr.mxu0 0.0
          %703 = vmatpush1.msra.mxu0 0.0
          %704 = vmatprep.subr.mxu0 0.0
          %705 = vmatpush1.msra.mxu0 0.0
          %706 = vmatprep.subr.mxu0 0.0
          %707 = vmatpush1.msra.mxu0 0.0
          %708 = vmatprep.subr.mxu0 0.0
          %709 = vmatpush1.msra.mxu0 0.0
          %710 = vmatprep.subr.mxu0 0.0
          %711 = vmatpush1.msra.mxu0 0.0
          %712 = vmatprep.subr.mxu0 0.0
          %713 = vmatpush1.msra.mxu0 0.0
          %714 = vmatprep.subr.mxu0 0.0
          %715 = vmatpush1.msra.mxu0 0.0
          %716 = vmatprep.subr.mxu0 0.0
          %717 = vmatpush1.msra.mxu0 0.0
          %718 = vmatprep.subr.mxu0 0.0
          %719 = vmatpush1.msra.mxu0 0.0
          %720 = vmatprep.subr.mxu0 0.0
          %721 = vmatpush1.msra.mxu0 0.0
          %722 = vmatprep.subr.mxu0 0.0
          %723 = vmatpush1.msra.mxu0 0.0
          %724 = vmatprep.subr.mxu0 0.0
          %725 = vmatpush1.msra.mxu0 0.0
          %726 = vmatprep.subr.mxu0 0.0
          %727 = vmatpush1.msra.mxu0 0.0
          %728 = vmatprep.subr.mxu0 0.0
          %729 = vmatpush1.msra.mxu0 0.0
          %730 = vmatprep.subr.mxu0 0.0
          %731 = vmatpush1.msra.mxu0 0.0
          %732 = vmatprep.subr.mxu0 0.0
          %733 = vmatpush1.msra.mxu0 0.0
          %734 = vmatprep.subr.mxu0 0.0
          %735 = vmatpush1.msra.mxu0 0.0
          %736 = vmatprep.subr.mxu0 0.0
          %737 = vmatpush1.msra.mxu0 0.0
          %738 = vmatprep.mubr.f32.mxu0 0.0
          %739 = vmatmul.mubr.f32.gmra.mrb[0].mxu0 %v672
          %v740 = vpop.f32.mrb[0].mxu0
          %v741 = vadd.f32 %v668, %v740
          %v742 = vpop.f32.mrb[0].mxu0
          %743 = vdwg.mxu0
          %vm744 = vcmask 254976
          %745 = vst.msk [vmem:[#allocation2] sm:$0x3] %vm744, %v741
          %vm746 = vcmask 1024
          %747 = vst.msk [vmem:[#allocation3] sm:$0x3] %vm746, -1e+30
          %748 = vst.msk [vmem:[#allocation4] sm:$0x3] %vm746, 0.0
          %749 = vst.msk [vmem:[#allocation5] sm:$0x3] %vm744, 0.0
        $region88: #{tpu_custom_call.1} parent=59 // pred_fallthru
          _
        %v750 = vld [vmem:[#allocation7] sm:$0xff]
        %v751 = vld [vmem:[#allocation7 + $0x8] sm:$0xff]
        %v752 = vld [vmem:[%s542] sm:$0xff]
        %v753 = vld [vmem:[%s542 + $0x8] sm:$0xff]
        %v754 = vld [vmem:[%s542 + $0x10] sm:$0xff]
        %v755 = vld [vmem:[%s542 + $0x18] sm:$0xff]
        %vm756 = vcmask 261120
        %v758 = vsel %vm756, %v750, 0
        %v761 = vsel %vm756, %v751, 0
        %763 = vmatprep.subr.mxu0 0.0
        %764 = vmatpush1.msra.mxu0 %v752
        %765 = vmatprep.subr.mxu0 0.0
        %766 = vmatpush1.msra.mxu0 %v753
        %767 = vmatprep.subr.mxu0 0.0
        %768 = vmatpush1.msra.mxu0 %v754
        %769 = vmatprep.subr.mxu0 0.0
        %770 = vmatpush1.msra.mxu0 %v755
        %771 = vmatprep.subr.mxu0 0.0
        %772 = vmatpush1.msra.mxu0 0.0
        %773 = vmatprep.subr.mxu0 0.0
        %774 = vmatpush1.msra.mxu0 0.0
        %775 = vmatprep.subr.mxu0 0.0
        %776 = vmatpush1.msra.mxu0 0.0
        %777 = vmatprep.subr.mxu0 0.0
        %778 = vmatpush1.msra.mxu0 0.0
        %779 = vmatprep.subr.mxu0 0.0
        %780 = vmatpush1.msra.mxu0 0.0
        %781 = vmatprep.subr.mxu0 0.0
        %782 = vmatpush1.msra.mxu0 0.0
        %783 = vmatprep.subr.mxu0 0.0
        %784 = vmatpush1.msra.mxu0 0.0
        %785 = vmatprep.subr.mxu0 0.0
        %786 = vmatpush1.msra.mxu0 0.0
        %787 = vmatprep.subr.mxu0 0.0
        %788 = vmatpush1.msra.mxu0 0.0
        %789 = vmatprep.subr.mxu0 0.0
        %790 = vmatpush1.msra.mxu0 0.0
        %791 = vmatprep.subr.mxu0 0.0
        %792 = vmatpush1.msra.mxu0 0.0
        %793 = vmatprep.subr.mxu0 0.0
        %794 = vmatpush1.msra.mxu0 0.0
        %795 = vmatprep.subr.mxu0 0.0
        %796 = vmatpush1.msra.mxu0 0.0
        %797 = vmatprep.subr.mxu0 0.0
        %798 = vmatpush1.msra.mxu0 0.0
        %799 = vmatprep.subr.mxu0 0.0
        %800 = vmatpush1.msra.mxu0 0.0
        %801 = vmatprep.subr.mxu0 0.0
        %802 = vmatpush1.msra.mxu0 0.0
        %803 = vmatprep.subr.mxu0 0.0
        %804 = vmatpush1.msra.mxu0 0.0
        %805 = vmatprep.subr.mxu0 0.0
        %806 = vmatpush1.msra.mxu0 0.0
        %807 = vmatprep.subr.mxu0 0.0
        %808 = vmatpush1.msra.mxu0 0.0
        %809 = vmatprep.subr.mxu0 0.0
        %810 = vmatpush1.msra.mxu0 0.0
        %811 = vmatprep.subr.mxu0 0.0
        %812 = vmatpush1.msra.mxu0 0.0
        %813 = vmatprep.subr.mxu0 0.0
        %814 = vmatpush1.msra.mxu0 0.0
        %815 = vmatprep.subr.mxu0 0.0
        %816 = vmatpush1.msra.mxu0 0.0
        %817 = vmatprep.subr.mxu0 0.0
        %818 = vmatpush1.msra.mxu0 0.0
        %819 = vmatprep.subr.mxu0 0.0
        %820 = vmatpush1.msra.mxu0 0.0
        %821 = vmatprep.subr.mxu0 0.0
        %822 = vmatpush1.msra.mxu0 0.0
        %823 = vmatprep.subr.mxu0 0.0
        %824 = vmatpush1.msra.mxu0 0.0
        %825 = vmatprep.subr.mxu0 0.0
        %826 = vmatpush1.msra.mxu0 0.0
        %827 = vmatprep.mubr.f32.mxu0 0.0
        %828 = vmatmul.mubr.f32.gmra.mrb[0].mxu0 %v758
        %v829 = vpop.f32.mrb[0].mxu0
        %v830 = vadd.f32 0.0, %v829
        %v831 = vpop.f32.mrb[0].mxu0
        %832 = vmatprep.mubr.f32.mxu0 0.0
        %833 = vmatmul.mubr.f32.gmra.mrb[0].mxu0 %v761
        %v834 = vpop.f32.mrb[0].mxu0
        %v835 = vadd.f32 0.0, %v834
        %v836 = vpop.f32.mrb[0].mxu0
        %837 = vdwg.mxu0
        %v838 = vld [vmem:[%s551] sm:$0xff]
        %v839 = vld [vmem:[%s551 + $0x8] sm:$0xff]
        %v840 = vld [vmem:[%s551 + $0x10] sm:$0xff]
        %v841 = vld [vmem:[%s551 + $0x18] sm:$0xff]
        %842 = vmatprep.subr.mxu0 0.0
        %843 = vmatpush1.msra.mxu0 %v838
        %844 = vmatprep.subr.mxu0 0.0
        %845 = vmatpush1.msra.mxu0 %v839
        %846 = vmatprep.subr.mxu0 0.0
        %847 = vmatpush1.msra.mxu0 %v840
        %848 = vmatprep.subr.mxu0 0.0
        %849 = vmatpush1.msra.mxu0 %v841
        %850 = vmatprep.subr.mxu0 0.0
        %851 = vmatpush1.msra.mxu0 0.0
        %852 = vmatprep.subr.mxu0 0.0
        %853 = vmatpush1.msra.mxu0 0.0
        %854 = vmatprep.subr.mxu0 0.0
        %855 = vmatpush1.msra.mxu0 0.0
        %856 = vmatprep.subr.mxu0 0.0
        %857 = vmatpush1.msra.mxu0 0.0
        %858 = vmatprep.subr.mxu0 0.0
        %859 = vmatpush1.msra.mxu0 0.0
        %860 = vmatprep.subr.mxu0 0.0
        %861 = vmatpush1.msra.mxu0 0.0
        %862 = vmatprep.subr.mxu0 0.0
        %863 = vmatpush1.msra.mxu0 0.0
        %864 = vmatprep.subr.mxu0 0.0
        %865 = vmatpush1.msra.mxu0 0.0
        %866 = vmatprep.subr.mxu0 0.0
        %867 = vmatpush1.msra.mxu0 0.0
        %868 = vmatprep.subr.mxu0 0.0
        %869 = vmatpush1.msra.mxu0 0.0
        %870 = vmatprep.subr.mxu0 0.0
        %871 = vmatpush1.msra.mxu0 0.0
        %872 = vmatprep.subr.mxu0 0.0
        %873 = vmatpush1.msra.mxu0 0.0
        %874 = vmatprep.subr.mxu0 0.0
        %875 = vmatpush1.msra.mxu0 0.0
        %876 = vmatprep.subr.mxu0 0.0
        %877 = vmatpush1.msra.mxu0 0.0
        %878 = vmatprep.subr.mxu0 0.0
        %879 = vmatpush1.msra.mxu0 0.0
        %880 = vmatprep.subr.mxu0 0.0
        %881 = vmatpush1.msra.mxu0 0.0
        %882 = vmatprep.subr.mxu0 0.0
        %883 = vmatpush1.msra.mxu0 0.0
        %884 = vmatprep.subr.mxu0 0.0
        %885 = vmatpush1.msra.mxu0 0.0
        %886 = vmatprep.subr.mxu0 0.0
        %887 = vmatpush1.msra.mxu0 0.0
        %888 = vmatprep.subr.mxu0 0.0
        %889 = vmatpush1.msra.mxu0 0.0
        %890 = vmatprep.subr.mxu0 0.0
        %891 = vmatpush1.msra.mxu0 0.0
        %892 = vmatprep.subr.mxu0 0.0
        %893 = vmatpush1.msra.mxu0 0.0
        %894 = vmatprep.subr.mxu0 0.0
        %895 = vmatpush1.msra.mxu0 0.0
        %896 = vmatprep.subr.mxu0 0.0
        %897 = vmatpush1.msra.mxu0 0.0
        %898 = vmatprep.subr.mxu0 0.0
        %899 = vmatpush1.msra.mxu0 0.0
        %900 = vmatprep.subr.mxu0 0.0
        %901 = vmatpush1.msra.mxu0 0.0
        %902 = vmatprep.subr.mxu0 0.0
        %903 = vmatpush1.msra.mxu0 0.0
        %904 = vmatprep.subr.mxu0 0.0
        %905 = vmatpush1.msra.mxu0 0.0
        %906 = vmatprep.mubr.f32.mxu0 0.0
        %907 = vmatmul.mubr.f32.gmra.mrb[0].mxu0 %v758
        %v908 = vpop.f32.mrb[0].mxu0
        %v909 = vadd.f32 0.0, %v908
        %v910 = vpop.f32.mrb[0].mxu0
        %911 = vmatprep.mubr.f32.mxu0 0.0
        %912 = vmatmul.mubr.f32.gmra.mrb[0].mxu0 %v761
        %v913 = vpop.f32.mrb[0].mxu0
        %v914 = vadd.f32 0.0, %v913
        %v915 = vpop.f32.mrb[0].mxu0
        %916 = vdwg.mxu0
        %v917 = vld [vmem:[#allocation2] sm:$0x3]
        %v920 = vunpack.c.l.s4 1966171168
        %v921 = vunpack.c.0.s8 %v920
        %v922 = vlaneseq
        %v923 = vshrl.u32 %v922, 7
        %v924 = vsub.s32 %v921, %v923
        %v925 = vrot.slane %v917, %v924
        %v926 = vcombine.high %v925, %v925
        %v928 = vunpack.c.l.s4 1966171168
        %v929 = vunpack.c.0.s8 %v928
        %v930 = vlaneseq
        %v931 = vshrl.u32 %v930, 7
        %v932 = vsub.s32 %v929, %v931
        %v933 = vrot.slane %v925, %v932
        %v935 = vunpack.c.l.s4 1966171168
        %v936 = vunpack.c.0.s8 %v935
        %v937 = vlaneseq
        %v938 = vshrl.u32 %v937, 7
        %v939 = vsub.s32 %v936, %v938
        %v940 = vrot.slane %v926, %v939
        %v941 = vlaneseq
        %v942 = vshrl.u32 %v941, 7
        %v943 = vsub.s32 0, %v942
        %v944 = vrot.slane %v933, %v943
        %v945 = vlaneseq
        %v946 = vshrl.u32 %v945, 7
        %v947 = vsub.s32 0, %v946
        %v948 = vrot.slane %v940, %v947
        %v951 = vadd.f32 %v830, %v944
        %v952 = vadd.f32 %v835, %v948
        %v953 = vtanh.pop %v951
        %v954 = vtanh.pop %v952
        %v955 = vld [vmem:[%s645] sm:$0x1]
        %v957 = vlaneseq
        %v958 = vshrl.u32 %v957, 7
        %v959 = vsub.s32 0, %v958
        %v960 = vrot.slane %v955, %v959
        %v962 = vmul.f32 %v953, %v960
        %v963 = vmul.f32 %v954, %v960
        %v964 = vsel %vm756, %v962, 0.0
        %965 = vadd.xlane.f32.xlu0 %v964
        %v966 = vpop.xlane.xlu0 %965
        %v967 = vsel %vm756, %v963, 0.0
        %968 = vadd.xlane.f32.xlu0 %v967
        %v969 = vpop.xlane.xlu0 %968
        %v970 = vld [vmem:[%s648] sm:$0x1]
        %v972 = vlaneseq
        %v973 = vshrl.u32 %v972, 7
        %v974 = vsub.s32 0, %v973
        %v975 = vrot.slane %v970, %v974
        %976 = vset.pattern.permute.xlu0 0
        %977 = vperm.xlu0 %976, %v975
        %v978 = vpop.permute.xlu0 %977
        %v980 = vadd.f32 %v966, %v978
        %v981 = vadd.f32 %v969, %v978
        %s982 = smul.u32 %s41, 8
        %v983 = vlaneseq
        %v984 = vand.u32 %v983, 127
        %v985 = vstv %s982
        %v986 = vadd.s32 %v985, %v984
        %v987 = vld [vmem:[%s634] sm:$0x3]
        %988 = vset.pattern.permute.xlu0 0
        %989 = vperm.xlu0 %988, %v987
        %v990 = vpop.permute.xlu0 %989
        %vm991 = vcmp.lt.s32.totalorder %v986, %v990
        %v992 = vmul.f32 %v980, 0.17677669
        %v993 = vmul.f32 %v981, 0.17677669
        %v996 = vlaneseq
        %v997 = vshrl.u32 %v996, 7
        %v998 = vsub.s32 %v984, %v997
        %v999 = vrot.slane %v992, %v998
        %v1000 = vlaneseq
        %v1001 = vshrl.u32 %v1000, 7
        %v1002 = vsub.s32 %v984, %v1001
        %v1003 = vrot.slane %v993, %v1002
        %vm1004 = vcmask 1041409
        %v1005 = vsel %vm1004, %v1003, %v999
        %v1007 = vsel %vm991, %v1005, -1e+30
        %vm1008 = vcmask 58368
        %1009 = vst.msk [vmem:[%s630] sm:$0x3] %vm1008, %v1007
        %v1010 = vld [vmem:[#allocation3] sm:$0x3]
        %v1011 = vsel %vm1008, %v1007, -inf
        %1012 = vmax.xlane.f32.xlu0 %v1011
        %v1013 = vpop.xlane.xlu0 %1012
        %v1014 = vmax.f32 %v1010, %v1013
        %v1015 = vsub.f32 %v1010, %v1014
        %v1016 = vmul.f32 %v1015, 1.442695
        %v1017 = vpow.pop %v1016
        %1019 = vset.pattern.permute.xlu0 0
        %1020 = vperm.xlu0 %1019, %v1014
        %v1021 = vpop.permute.xlu0 %1020
        %v1023 = vsub.f32 %v1007, %v1021
        %v1024 = vmul.f32 %v1023, 1.442695
        %v1025 = vpow.pop %v1024
        %v1026 = vld [vmem:[#allocation4] sm:$0x3]
        %v1027 = vmul.f32 %v1017, %v1026
        %v1028 = vsel %vm1008, %v1025, 0.0
        %1029 = vadd.xlane.f32.xlu0 %v1028
        %v1030 = vpop.xlane.xlu0 %1029
        %v1031 = vadd.f32 %v1027, %v1030
        %vm1032 = vcmask 1024
        %1033 = vst.msk [vmem:[#allocation4] sm:$0x3] %vm1032, %v1031
        %v1034 = vld [vmem:[#allocation5] sm:$0x3]
        %1036 = vset.pattern.permute.xlu0 0
        %1037 = vperm.xlu0 %1036, %v1017
        %v1038 = vpop.permute.xlu0 %1037
        %v1040 = vmul.f32 %v1038, %v1034
        %v1041 = vlaneseq
        %v1042 = vshrl.u32 %v1041, 7
        %v1043 = vsub.s32 0, %v1042
        %v1044 = vrot.slane %v1025, %v1043
        %1046 = vbcast.lane.b32.xlu0 %v1044, 256
        %v1047 = vpop.permute.xlu0 %1046
        %v1048 = vlaneseq
        %v1049 = vshrl.u32 %v1048, 7
        %v1050 = vsub.s32 1, %v1049
        %v1051 = vrot.slane %v1025, %v1050
        %1053 = vbcast.lane.b32.xlu0 %v1051, 256
        %v1054 = vpop.permute.xlu0 %1053
        %v1055 = vmul.f32 %v1047, %v909
        %v1056 = vmul.f32 %v1054, %v914
        %v1057 = vsel %vm756, %v1055, 0.0
        %v1058 = vrot.slane %v1057, 4
        %v1059 = vadd.f32 %v1057, %v1058
        %v1060 = vrot.slane %v1059, 2
        %v1061 = vadd.f32 %v1059, %v1060
        %v1062 = vrot.slane %v1061, 1
        %v1063 = vadd.f32 %v1061, %v1062
        %v1064 = vsel %vm756, %v1056, 0.0
        %v1065 = vrot.slane %v1064, 4
        %v1066 = vadd.f32 %v1064, %v1065
        %v1067 = vrot.slane %v1066, 2
        %v1068 = vadd.f32 %v1066, %v1067
        %v1069 = vrot.slane %v1068, 1
        %v1070 = vadd.f32 %v1068, %v1069
        %v1073 = vsel %vm1004, %v1070, %v1063
        %v1075 = vadd.f32 %v1040, %v1073
        %vm1076 = vcmask 254976
        %1077 = vst.msk [vmem:[#allocation5] sm:$0x3] %vm1076, %v1075
        %1078 = vst.msk [vmem:[#allocation3] sm:$0x3] %vm1032, %v1014
        // Predicated region
        $region89: #{tpu_custom_call.1} parent=59 // pred_check
          %p1079 = pneg %p650
        $region90: #{tpu_custom_call.1} parent=59 // pred_check_branch
          %1081 = sbr.rel (%p1079) target = $region92
        $region91: #{tpu_custom_call.1} parent=59 // pred_region
          %v1082 = vld [vmem:[#allocation4] sm:$0x3]
          %v1083 = vrcp.pop %v1082
          %v1084 = vld [vmem:[#allocation5] sm:$0x3]
          %1086 = vset.pattern.permute.xlu0 0
          %1087 = vperm.xlu0 %1086, %v1083
          %v1088 = vpop.permute.xlu0 %1087
          %v1090 = vmul.f32 %v1084, %v1088
          %v1091 = vld [vmem:[#allocation6] sm:$0x3]
          %v1092 = vld [vmem:[%s560] sm:$0xff]
          %v1093 = vld [vmem:[%s560 + $0x8] sm:$0xff]
          %v1094 = vld [vmem:[%s560 + $0x10] sm:$0xff]
          %v1095 = vld [vmem:[%s560 + $0x18] sm:$0xff]
          %v1097 = vsel %vm756, %v1090, 0
          %1099 = vmatprep.subr.mxu0 0.0
          %1100 = vmatpush1.msra.mxu0 %v1092
          %1101 = vmatprep.subr.mxu0 0.0
          %1102 = vmatpush1.msra.mxu0 %v1093
          %1103 = vmatprep.subr.mxu0 0.0
          %1104 = vmatpush1.msra.mxu0 %v1094
          %1105 = vmatprep.subr.mxu0 0.0
          %1106 = vmatpush1.msra.mxu0 %v1095
          %1107 = vmatprep.subr.mxu0 0.0
          %1108 = vmatpush1.msra.mxu0 0.0
          %1109 = vmatprep.subr.mxu0 0.0
          %1110 = vmatpush1.msra.mxu0 0.0
          %1111 = vmatprep.subr.mxu0 0.0
          %1112 = vmatpush1.msra.mxu0 0.0
          %1113 = vmatprep.subr.mxu0 0.0
          %1114 = vmatpush1.msra.mxu0 0.0
          %1115 = vmatprep.subr.mxu0 0.0
          %1116 = vmatpush1.msra.mxu0 0.0
          %1117 = vmatprep.subr.mxu0 0.0
          %1118 = vmatpush1.msra.mxu0 0.0
          %1119 = vmatprep.subr.mxu0 0.0
          %1120 = vmatpush1.msra.mxu0 0.0
          %1121 = vmatprep.subr.mxu0 0.0
          %1122 = vmatpush1.msra.mxu0 0.0
          %1123 = vmatprep.subr.mxu0 0.0
          %1124 = vmatpush1.msra.mxu0 0.0
          %1125 = vmatprep.subr.mxu0 0.0
          %1126 = vmatpush1.msra.mxu0 0.0
          %1127 = vmatprep.subr.mxu0 0.0
          %1128 = vmatpush1.msra.mxu0 0.0
          %1129 = vmatprep.subr.mxu0 0.0
          %1130 = vmatpush1.msra.mxu0 0.0
          %1131 = vmatprep.subr.mxu0 0.0
          %1132 = vmatpush1.msra.mxu0 0.0
          %1133 = vmatprep.subr.mxu0 0.0
          %1134 = vmatpush1.msra.mxu0 0.0
          %1135 = vmatprep.subr.mxu0 0.0
          %1136 = vmatpush1.msra.mxu0 0.0
          %1137 = vmatprep.subr.mxu0 0.0
          %1138 = vmatpush1.msra.mxu0 0.0
          %1139 = vmatprep.subr.mxu0 0.0
          %1140 = vmatpush1.msra.mxu0 0.0
          %1141 = vmatprep.subr.mxu0 0.0
          %1142 = vmatpush1.msra.mxu0 0.0
          %1143 = vmatprep.subr.mxu0 0.0
          %1144 = vmatpush1.msra.mxu0 0.0
          %1145 = vmatprep.subr.mxu0 0.0
          %1146 = vmatpush1.msra.mxu0 0.0
          %1147 = vmatprep.subr.mxu0 0.0
          %1148 = vmatpush1.msra.mxu0 0.0
          %1149 = vmatprep.subr.mxu0 0.0
          %1150 = vmatpush1.msra.mxu0 0.0
          %1151 = vmatprep.subr.mxu0 0.0
          %1152 = vmatpush1.msra.mxu0 0.0
          %1153 = vmatprep.subr.mxu0 0.0
          %1154 = vmatpush1.msra.mxu0 0.0
          %1155 = vmatprep.subr.mxu0 0.0
          %1156 = vmatpush1.msra.mxu0 0.0
          %1157 = vmatprep.subr.mxu0 0.0
          %1158 = vmatpush1.msra.mxu0 0.0
          %1159 = vmatprep.subr.mxu0 0.0
          %1160 = vmatpush1.msra.mxu0 0.0
          %1161 = vmatprep.subr.mxu0 0.0
          %1162 = vmatpush1.msra.mxu0 0.0
          %1163 = vmatprep.mubr.f32.mxu0 0.0
          %1164 = vmatmul.mubr.f32.gmra.mrb[0].mxu0 %v1097
          %v1165 = vpop.f32.mrb[0].mxu0
          %v1166 = vadd.f32 0.0, %v1165
          %v1167 = vpop.f32.mrb[0].mxu0
          %1168 = vdwg.mxu0
          %v1169 = vadd.f32 %v1091, %v1166
          %1170 = vst.msk [vmem:[#allocation6] sm:$0x3] %vm1076, %v1169
        $region92: #{tpu_custom_call.1} parent=59 // pred_fallthru
          _
        %p1171 = scmp.eq.s32.totalorder %s40, 1
        %p1172 = pnand %p1171, %p650
        %p1173 = pneg %p1172
        // Predicated region
        $region93: #{tpu_custom_call.1} parent=59 // pred_check
          _
        $region94: #{tpu_custom_call.1} parent=59 // pred_check_branch
          %1175 = sbr.rel (%p1172) target = $region96
        $region95: #{tpu_custom_call.1} parent=59 // pred_region
          %v1176 = vld [vmem:[#allocation6] sm:$0x3]
          %1177 = vst.msk [vmem:[#allocation16] sm:$0x3] %vm1076, %v1176
        $region96: #{tpu_custom_call.1} parent=59 // pred_fallthru
          _
        %s1178 = sand.u32 %s353, 1
        %s1179 = scalar_lea.sflag [#allocation18], %s1178
        %s1180 = sand.u32 %s353, 1
        %s1181 = smul.addr %s1180, 2
        %s1182 = scalar_lea.vmem [#allocation17], %s1181
        // Predicated region
        $region97: #{tpu_custom_call.1} parent=59 // pred_check
          %p1183 = pneg %p333
        $region98: #{tpu_custom_call.1} parent=59 // pred_check_branch
          %1185 = sbr.rel (%p1183) target = $region100
        $region99: #{tpu_custom_call.1} parent=59 // pred_region
          %s1187 = ssub.s32 32, 32
          %1188 = vsyncadd [#allocation9], %s1187
          %s1189 = smul.addr %s39, 32
          %s1190 = scalar_lea.hbm %s10, %s1189
          %s1192 = sshll.u32 [#allocation16], 4
          %s1193 = int_to_ptr.vmem [resolvable:$true] %s1192
          %1195 = dma.vmem_to_hbm [thread:$0]  %s1193, 32, %s1190, [#allocation9]
        $region100: #{tpu_custom_call.1} parent=59 // pred_fallthru
          _
        // Predicated region
        $region101: #{tpu_custom_call.1} parent=59 // pred_check
          %p1196 = pneg %p363
        $region102: #{tpu_custom_call.1} parent=59 // pred_check_branch
          %1198 = sbr.rel (%p1196) target = $region104
        $region103: #{tpu_custom_call.1} parent=59 // pred_region
          %s1200 = ssub.s32 32, 32
          %1201 = vsyncadd %s1179, %s1200
          %s1202 = sadd.s32 %s41, %s39
          %s1203 = sadd.s32 %s1202, %s40
          %s1204 = smul.addr %s1203, 32
          %s1205 = scalar_lea.hbm %s11, %s1204
          %s1207 = sshll.u32 %s1182, 4
          %s1208 = int_to_ptr.vmem [resolvable:$true] %s1207
          %1210 = dma.vmem_to_hbm [thread:$0]  %s1208, 32, %s1205, %s1179
        $region104: #{tpu_custom_call.1} parent=59 // pred_fallthru
          _
        // Predicated region
        $region105: #{tpu_custom_call.1} parent=59 // pred_check
          %p1211 = pneg %p333
        $region106: #{tpu_custom_call.1} parent=59 // pred_check_branch
          %1213 = sbr.rel (%p1211) target = $region108
        $region107: #{tpu_custom_call.1} parent=59 // pred_region
          %1214 = dma.done [#allocation9], 32
        $region108: #{tpu_custom_call.1} parent=59 // pred_fallthru
          _
      $region60: #{tpu_custom_call.1} parent=5 // pred_fallthru
        _
      %p1215 = scmp.le.s32.totalorder 2, %s29
      // Predicated region
      $region109: #{tpu_custom_call.1} parent=5 // pred_check
        %p1216 = pneg %p1215
      $region110: #{tpu_custom_call.1} parent=5 // pred_check_branch
        %1218 = sbr.rel (%p1216) target = $region112
      $region111: #{tpu_custom_call.1} parent=5 // pred_region
        %s1219 = ssub.s32 %s29, 2
        // Predicated region
        $region113: #{tpu_custom_call.1} parent=111 // pred_check
          %p1220 = pneg %p369
        $region114: #{tpu_custom_call.1} parent=111 // pred_check_branch
          %1222 = sbr.rel (%p1220) target = $region116
        $region115: #{tpu_custom_call.1} parent=111 // pred_region
          %s1223 = sand.u32 %s354, 1
          %s1224 = scalar_lea.sflag [#allocation18], %s1223
          %s1225 = sand.u32 %s354, 1
          %s1226 = smul.addr %s1225, 2
          %s1227 = scalar_lea.vmem [#allocation17], %s1226
          %1228 = dma.done %s1224, 32
        $region116: #{tpu_custom_call.1} parent=111 // pred_fallthru
          _
      $region112: #{tpu_custom_call.1} parent=5 // pred_fallthru
        _
    $region6: #{tpu_custom_call.1} parent=1 // loop_footer
      %s33 = sadd.s32 1, %s29
    $region7: #{tpu_custom_call.1} parent=1 // loop_footer_branch
      %28 = sbr.rel target = $region3
    $region8: #{tpu_custom_call.1} parent=1 // loop_exit
      _
    %1229 = vsyncpa [#allocation8], 1
    %s1230 = scalar_lea.sflag [#allocation8], 1
    %1231 = vsyncpa %s1230, 1
    %1232 = vsyncpa [#allocation11], 1
    %s1233 = scalar_lea.sflag [#allocation11], 1
    %1234 = vsyncpa %s1233, 1
    %1235 = vsyncpa [#allocation14], 1
    %s1236 = scalar_lea.sflag [#allocation14], 1
    %1237 = vsyncpa %s1236, 1
    %1238 = vsyncpa [#allocation9], 1
    %s1239 = scalar_lea.sflag [#allocation9], 1
    %1240 = vsyncpa %s1239, 1
    %1241 = vsyncpa [#allocation18], 1
    %s1242 = scalar_lea.sflag [#allocation18], 1
    %1243 = vsyncpa %s1242, 1

</llo_original>
